<compile_context>
chip_gen: v6e
topology: v6e:2x2x1
jax: 0.10.0
libtpu: 0.0.40
codegen_flags: <defaults>
</compile_context>

<pallas_src>
import jax
import jax.numpy as jnp
import numpy as np
from jax.experimental import pallas as pl
from jax.experimental.pallas import tpu as pltpu


CIN_PAD = 8                     # padded per-tap input-channel count (sublane aligned)
K_TAPS = 9                      # 3x3 conv taps
K_COLS = K_TAPS * CIN_PAD       # 72 packed-weight columns
K_LANE = K_COLS + CIN_PAD       # 80: 72 weight cols + bias col (72) + zero pad


# ---------------------------------------------------------------------------
# Static tap geometry (numpy, baked as constants)
# ---------------------------------------------------------------------------
def _tap_geometry(N, H, W):
    """Per-tap lane-roll shifts and SAME-padding validity masks for the
    lane-dense (C, 2P) layout (output image lanes [0,P), target lanes [P,2P))."""
    P2 = 2 * N * H * W
    p = np.arange(P2)
    hh = (p // W) % H
    ww = p % W
    shifts, masks = [], []
    for dy in range(3):
        for dx in range(3):
            oy, ox = dy - 1, dx - 1
            valid = ((hh + oy >= 0) & (hh + oy < H) &
                     (ww + ox >= 0) & (ww + ox < W))
            masks.append(valid.astype(np.float32))
            shifts.append(int((-(oy * W + ox)) % P2))
    masks = np.stack(masks, axis=0).reshape(K_TAPS, 1, P2)
    return shifts, jnp.asarray(masks)


# ---------------------------------------------------------------------------
# Fused Pallas kernel
# ---------------------------------------------------------------------------
def _make_fused_loss_kernel(N, C_in, H, W, n_levels, c_out, shifts):
    """Refs: x (8, 2P) VMEM, masks (9, 1, 2P) VMEM, wb (n_levels, 8, 80) VMEM,
    o (1,) f32 SMEM."""
    P = N * H * W
    P2 = 2 * P

    def kernel(x_ref, masks_ref, wb_ref, o_ref):
        # Hoisted sublane broadcasts of the padding masks (shared by all levels).
        m_full = [None] * K_TAPS
        for t in range(K_TAPS):
            if shifts[t] != 0:
                m_full[t] = jnp.broadcast_to(masks_ref[t], (CIN_PAD, P2))

        # Bias selector slab: row 0 = ones -> bias rides the im2col matmul.
        bias_slab = (jax.lax.broadcasted_iota(jnp.int32, (CIN_PAD, P2), 0) == 0
                     ).astype(jnp.float32)

        x = x_ref[...]                                   # (8, 2P), rows >= C_in are zero

        # Level 0: raw-image MSE; output lanes [:P], target lanes [P:] (128-aligned).
        d = x[:, :P] - x[:, P:]
        partial = d * d * (1.0 / (C_in * P))             # (8, P) deferred-reduction acc

        f = x
        for lvl in range(n_levels):
            taps = []
            for t in range(K_TAPS):
                if shifts[t] == 0:
                    taps.append(f)                       # center tap: always valid
                else:
                    # XLU lane rotation + zero the out-of-image lanes (SAME pad).
                    taps.append(pltpu.roll(f, shift=shifts[t], axis=1) * m_full[t])
            col = jnp.concatenate(taps + [bias_slab], axis=0)       # (80, 2P) im2col
            f = jnp.maximum(                                        # conv + bias + ReLU
                jnp.dot(wb_ref[lvl], col, preferred_element_type=jnp.float32), 0.0)
            d = f[:, :P] - f[:, P:]
            partial = partial + d * d * (1.0 / (c_out * P))

        o_ref[0] = jnp.sum(partial)                      # single final reduction

    return kernel


# ---------------------------------------------------------------------------
# Wrapper
# ---------------------------------------------------------------------------
def _pack_level_params(w, b):
    """OIHW (Cout, Cin, 3, 3) + (Cout,) -> (Cout, 80) packed weight.
    Column t*8 + c holds w[:, c, dy, dx] with t = dy*3 + dx (Cin zero-padded
    to 8); column 72 holds the bias (multiplies the ones row of the tap stack)."""
    cout, cin = w.shape[0], w.shape[1]
    w9 = jnp.transpose(w, (2, 3, 0, 1)).reshape(K_TAPS, cout, cin)     # (9, Cout, Cin)
    wp = jnp.zeros((K_TAPS, cout, CIN_PAD), jnp.float32).at[:, :, :cin].set(w9)
    wp = jnp.transpose(wp, (1, 0, 2)).reshape(cout, K_COLS)            # (Cout, 72)
    packed = jnp.zeros((cout, K_LANE), jnp.float32)
    packed = packed.at[:, :K_COLS].set(wp)
    packed = packed.at[:, K_COLS].set(b)
    return packed


def spatial_loss(output, target, params):
    """output/target: (N, C, H, W) f32 (PyTorch NCHW).
    params: tuple of (weight OIHW (Cout, Cin, 3, 3), bias (Cout,)) per conv level."""
    N, C, H, W = output.shape
    P = N * H * W
    c_out = params[0][0].shape[0]
    assert C <= CIN_PAD and c_out <= CIN_PAD

    # Both images through one conv stream: concat on the lane axis -> (8, 2P).
    both = jnp.stack([output, target], axis=0)                    # (2, N, C, H, W)
    x = jnp.transpose(both, (2, 0, 1, 3, 4)).reshape(C, 2 * P)    # (C, 2P) lane-dense
    x = jnp.pad(x, ((0, CIN_PAD - C), (0, 0)))                    # zero-pad channels

    wb = jnp.stack([_pack_level_params(w, b) for w, b in params], axis=0)  # (L, 8, 80)

    shifts, masks = _tap_geometry(N, H, W)                        # static constants

    vmem = pl.BlockSpec(memory_space=pltpu.MemorySpace.VMEM)
    smem = pl.BlockSpec(memory_space=pltpu.MemorySpace.SMEM)
    out = pl.pallas_call(
        _make_fused_loss_kernel(N, C, H, W, len(params), c_out, shifts),
        out_shape=jax.ShapeDtypeStruct((1,), jnp.float32),
        in_specs=[vmem, vmem, vmem],
        out_specs=smem,
    )(x, masks, wb)
    return out[0]


# ---------------------------------------------------------------------------
# Pure-JAX reference (correctness check only)
# ---------------------------------------------------------------------------
def _ref_spatial_loss(output, target, params):
    def conv_relu(x, w, b):
        y = jax.lax.conv_general_dilated(
            x, w, window_strides=(1, 1), padding="SAME",
            dimension_numbers=("NCHW", "OIHW", "NCHW"))
        return jnp.maximum(y + b[None, :, None, None], 0.0)

    def feats(img):
        ret, y = [img], img
        for w, b in params:
            y = conv_relu(y, w, b)
            ret.append(y)
        return ret

    loss = jnp.float32(0.0)
    for a, b in zip(feats(output), feats(target)):
        loss = loss + jnp.mean((a - b) ** 2)
    return loss


# ---------------------------------------------------------------------------
if __name__ == "__main__":
    key = jax.random.PRNGKey(0)
    k_out, k_tgt, kw1, kb1, kw2, kb2 = jax.random.split(key, 6)

    N, C, H, W, C1, C2 = 2, 4, 16, 16, 8, 8          # NCHW input [2, 4, 16, 16]

    output = jax.random.normal(k_out, (N, C, H, W), jnp.float32)
    target = jax.random.normal(k_tgt, (N, C, H, W), jnp.float32)

    # Deterministic synthetic "features" parameters (not a checkpoint load).
    w1 = 0.1 * jax.random.normal(kw1, (C1, C, 3, 3), jnp.float32)   # OIHW
    b1 = 0.1 * jax.random.normal(kb1, (C1,), jnp.float32)
    w2 = 0.1 * jax.random.normal(kw2, (C2, C1, 3, 3), jnp.float32)
    b2 = 0.1 * jax.random.normal(kb2, (C2,), jnp.float32)
    params = ((w1, b1), (w2, b2))

    loss = jax.jit(spatial_loss)(output, target, params)
    loss = jax.block_until_ready(loss)

    ref = _ref_spatial_loss(output, target, params)
    assert jnp.allclose(loss, ref, rtol=2e-4, atol=1e-5), (float(loss), float(ref))

    print("KERNEL_OK")
</pallas_src>

<mosaic_0001>
module attributes {stable_mosaic.version = 11 : i64} {
  func.func @kernel(%arg0: memref<8x1024xf32, #tpu.memory_space<vmem>>, %arg1: memref<9x1x1024xf32, #tpu.memory_space<vmem>>, %arg2: memref<2x8x80xf32, #tpu.memory_space<vmem>>, %arg3: memref<1xf32, #tpu.memory_space<smem>>) attributes {dimension_semantics = [], scalar_prefetch = 0 : i64, scratch_operands = 0 : i64, tpu.core_type = #tpu.core_type<tc>} {
    %c0 = arith.constant 0 : index
    %c0_0 = arith.constant 0 : index
    %c0_1 = arith.constant 0 : index
    %0 = vector.load %arg1[%c0, %c0_0, %c0_1] : memref<9x1x1024xf32, #tpu.memory_space<vmem>>, vector<1x1x1024xf32>
    %1 = vector.shape_cast %0 : vector<1x1x1024xf32> to vector<1x1024xf32>
    %2 = vector.shape_cast %1 : vector<1x1024xf32> to vector<1x1024xf32>
    %3 = vector.broadcast %2 : vector<1x1024xf32> to vector<8x1024xf32>
    %c1 = arith.constant 1 : index
    %c0_2 = arith.constant 0 : index
    %c0_3 = arith.constant 0 : index
    %4 = vector.load %arg1[%c1, %c0_2, %c0_3] : memref<9x1x1024xf32, #tpu.memory_space<vmem>>, vector<1x1x1024xf32>
    %5 = vector.shape_cast %4 : vector<1x1x1024xf32> to vector<1x1024xf32>
    %6 = vector.shape_cast %5 : vector<1x1024xf32> to vector<1x1024xf32>
    %7 = vector.broadcast %6 : vector<1x1024xf32> to vector<8x1024xf32>
    %c2 = arith.constant 2 : index
    %c0_4 = arith.constant 0 : index
    %c0_5 = arith.constant 0 : index
    %8 = vector.load %arg1[%c2, %c0_4, %c0_5] : memref<9x1x1024xf32, #tpu.memory_space<vmem>>, vector<1x1x1024xf32>
    %9 = vector.shape_cast %8 : vector<1x1x1024xf32> to vector<1x1024xf32>
    %10 = vector.shape_cast %9 : vector<1x1024xf32> to vector<1x1024xf32>
    %11 = vector.broadcast %10 : vector<1x1024xf32> to vector<8x1024xf32>
    %c3 = arith.constant 3 : index
    %c0_6 = arith.constant 0 : index
    %c0_7 = arith.constant 0 : index
    %12 = vector.load %arg1[%c3, %c0_6, %c0_7] : memref<9x1x1024xf32, #tpu.memory_space<vmem>>, vector<1x1x1024xf32>
    %13 = vector.shape_cast %12 : vector<1x1x1024xf32> to vector<1x1024xf32>
    %14 = vector.shape_cast %13 : vector<1x1024xf32> to vector<1x1024xf32>
    %15 = vector.broadcast %14 : vector<1x1024xf32> to vector<8x1024xf32>
    %c5 = arith.constant 5 : index
    %c0_8 = arith.constant 0 : index
    %c0_9 = arith.constant 0 : index
    %16 = vector.load %arg1[%c5, %c0_8, %c0_9] : memref<9x1x1024xf32, #tpu.memory_space<vmem>>, vector<1x1x1024xf32>
    %17 = vector.shape_cast %16 : vector<1x1x1024xf32> to vector<1x1024xf32>
    %18 = vector.shape_cast %17 : vector<1x1024xf32> to vector<1x1024xf32>
    %19 = vector.broadcast %18 : vector<1x1024xf32> to vector<8x1024xf32>
    %c6 = arith.constant 6 : index
    %c0_10 = arith.constant 0 : index
    %c0_11 = arith.constant 0 : index
    %20 = vector.load %arg1[%c6, %c0_10, %c0_11] : memref<9x1x1024xf32, #tpu.memory_space<vmem>>, vector<1x1x1024xf32>
    %21 = vector.shape_cast %20 : vector<1x1x1024xf32> to vector<1x1024xf32>
    %22 = vector.shape_cast %21 : vector<1x1024xf32> to vector<1x1024xf32>
    %23 = vector.broadcast %22 : vector<1x1024xf32> to vector<8x1024xf32>
    %c7 = arith.constant 7 : index
    %c0_12 = arith.constant 0 : index
    %c0_13 = arith.constant 0 : index
    %24 = vector.load %arg1[%c7, %c0_12, %c0_13] : memref<9x1x1024xf32, #tpu.memory_space<vmem>>, vector<1x1x1024xf32>
    %25 = vector.shape_cast %24 : vector<1x1x1024xf32> to vector<1x1024xf32>
    %26 = vector.shape_cast %25 : vector<1x1024xf32> to vector<1x1024xf32>
    %27 = vector.broadcast %26 : vector<1x1024xf32> to vector<8x1024xf32>
    %c8 = arith.constant 8 : index
    %c0_14 = arith.constant 0 : index
    %c0_15 = arith.constant 0 : index
    %28 = vector.load %arg1[%c8, %c0_14, %c0_15] : memref<9x1x1024xf32, #tpu.memory_space<vmem>>, vector<1x1x1024xf32>
    %29 = vector.shape_cast %28 : vector<1x1x1024xf32> to vector<1x1024xf32>
    %30 = vector.shape_cast %29 : vector<1x1024xf32> to vector<1x1024xf32>
    %31 = vector.broadcast %30 : vector<1x1024xf32> to vector<8x1024xf32>
    %32 = tpu.iota {dimensions = array<i32: 0>} : vector<8x1024xi32>
    %c0_i32 = arith.constant 0 : i32
    %33 = vector.broadcast %c0_i32 : i32 to vector<8x1024xi32>
    %34 = arith.cmpi eq, %32, %33 : vector<8x1024xi32>
    %35 = arith.extui %34 : vector<8x1024xi1> to vector<8x1024xi32>
    %36 = arith.sitofp %35 : vector<8x1024xi32> to vector<8x1024xf32>
    %c0_16 = arith.constant 0 : index
    %c0_17 = arith.constant 0 : index
    %37 = vector.load %arg0[%c0_16, %c0_17] : memref<8x1024xf32, #tpu.memory_space<vmem>>, vector<8x1024xf32>
    %38 = vector.extract_strided_slice %37 {offsets = [0, 0], sizes = [8, 512], strides = [1, 1]} : vector<8x1024xf32> to vector<8x512xf32>
    %39 = vector.extract_strided_slice %37 {offsets = [0, 512], sizes = [8, 512], strides = [1, 1]} : vector<8x1024xf32> to vector<8x512xf32>
    %40 = arith.subf %38, %39 : vector<8x512xf32>
    %41 = arith.mulf %40, %40 : vector<8x512xf32>
    %cst = arith.constant 4.8828125E-4 : f32
    %42 = vector.broadcast %cst : f32 to vector<8x512xf32>
    %43 = arith.mulf %41, %42 : vector<8x512xf32>
    %c17_i32 = arith.constant 17 : i32
    %44 = tpu.dynamic_rotate %37 by %c17_i32 dim 1 : vector<8x1024xf32>, i32 -> vector<8x1024xf32>
    %45 = arith.mulf %44, %3 : vector<8x1024xf32>
    %c16_i32 = arith.constant 16 : i32
    %46 = tpu.dynamic_rotate %37 by %c16_i32 dim 1 : vector<8x1024xf32>, i32 -> vector<8x1024xf32>
    %47 = arith.mulf %46, %7 : vector<8x1024xf32>
    %c15_i32 = arith.constant 15 : i32
    %48 = tpu.dynamic_rotate %37 by %c15_i32 dim 1 : vector<8x1024xf32>, i32 -> vector<8x1024xf32>
    %49 = arith.mulf %48, %11 : vector<8x1024xf32>
    %c1_i32 = arith.constant 1 : i32
    %50 = tpu.dynamic_rotate %37 by %c1_i32 dim 1 : vector<8x1024xf32>, i32 -> vector<8x1024xf32>
    %51 = arith.mulf %50, %15 : vector<8x1024xf32>
    %c1023_i32 = arith.constant 1023 : i32
    %52 = tpu.dynamic_rotate %37 by %c1023_i32 dim 1 : vector<8x1024xf32>, i32 -> vector<8x1024xf32>
    %53 = arith.mulf %52, %19 : vector<8x1024xf32>
    %c1009_i32 = arith.constant 1009 : i32
    %54 = tpu.dynamic_rotate %37 by %c1009_i32 dim 1 : vector<8x1024xf32>, i32 -> vector<8x1024xf32>
    %55 = arith.mulf %54, %23 : vector<8x1024xf32>
    %c1008_i32 = arith.constant 1008 : i32
    %56 = tpu.dynamic_rotate %37 by %c1008_i32 dim 1 : vector<8x1024xf32>, i32 -> vector<8x1024xf32>
    %57 = arith.mulf %56, %27 : vector<8x1024xf32>
    %c1007_i32 = arith.constant 1007 : i32
    %58 = tpu.dynamic_rotate %37 by %c1007_i32 dim 1 : vector<8x1024xf32>, i32 -> vector<8x1024xf32>
    %59 = arith.mulf %58, %31 : vector<8x1024xf32>
    %60 = tpu.concatenate %45, %47, %49, %51, %37, %53, %55, %57, %59, %36 in 0 : vector<8x1024xf32>, vector<8x1024xf32>, vector<8x1024xf32>, vector<8x1024xf32>, vector<8x1024xf32>, vector<8x1024xf32>, vector<8x1024xf32>, vector<8x1024xf32>, vector<8x1024xf32>, vector<8x1024xf32> -> vector<80x1024xf32>
    %c0_18 = arith.constant 0 : index
    %c0_19 = arith.constant 0 : index
    %c0_20 = arith.constant 0 : index
    %61 = vector.load %arg2[%c0_18, %c0_19, %c0_20] : memref<2x8x80xf32, #tpu.memory_space<vmem>>, vector<1x8x80xf32>
    %62 = vector.shape_cast %61 : vector<1x8x80xf32> to vector<8x80xf32>
    %cst_21 = arith.constant dense<0.000000e+00> : vector<8x1024xf32>
    %63 = tpu.matmul %62, %60, %cst_21 {dimension_numbers = #tpu.dot_dimension_numbers<[1], [0], [0], [1], [0, 0, 1, 1], [], []>} : vector<8x80xf32>, vector<80x1024xf32>, vector<8x1024xf32> -> vector<8x1024xf32>
    %cst_22 = arith.constant 0.000000e+00 : f32
    %64 = vector.broadcast %cst_22 : f32 to vector<8x1024xf32>
    %65 = arith.maximumf %63, %64 : vector<8x1024xf32>
    %66 = vector.extract_strided_slice %65 {offsets = [0, 0], sizes = [8, 512], strides = [1, 1]} : vector<8x1024xf32> to vector<8x512xf32>
    %67 = vector.extract_strided_slice %65 {offsets = [0, 512], sizes = [8, 512], strides = [1, 1]} : vector<8x1024xf32> to vector<8x512xf32>
    %68 = arith.subf %66, %67 : vector<8x512xf32>
    %69 = arith.mulf %68, %68 : vector<8x512xf32>
    %cst_23 = arith.constant 2.44140625E-4 : f32
    %70 = vector.broadcast %cst_23 : f32 to vector<8x512xf32>
    %71 = arith.mulf %69, %70 : vector<8x512xf32>
    %72 = arith.addf %43, %71 : vector<8x512xf32>
    %c17_i32_24 = arith.constant 17 : i32
    %73 = tpu.dynamic_rotate %65 by %c17_i32_24 dim 1 : vector<8x1024xf32>, i32 -> vector<8x1024xf32>
    %74 = arith.mulf %73, %3 : vector<8x1024xf32>
    %c16_i32_25 = arith.constant 16 : i32
    %75 = tpu.dynamic_rotate %65 by %c16_i32_25 dim 1 : vector<8x1024xf32>, i32 -> vector<8x1024xf32>
    %76 = arith.mulf %75, %7 : vector<8x1024xf32>
    %c15_i32_26 = arith.constant 15 : i32
    %77 = tpu.dynamic_rotate %65 by %c15_i32_26 dim 1 : vector<8x1024xf32>, i32 -> vector<8x1024xf32>
    %78 = arith.mulf %77, %11 : vector<8x1024xf32>
    %c1_i32_27 = arith.constant 1 : i32
    %79 = tpu.dynamic_rotate %65 by %c1_i32_27 dim 1 : vector<8x1024xf32>, i32 -> vector<8x1024xf32>
    %80 = arith.mulf %79, %15 : vector<8x1024xf32>
    %c1023_i32_28 = arith.constant 1023 : i32
    %81 = tpu.dynamic_rotate %65 by %c1023_i32_28 dim 1 : vector<8x1024xf32>, i32 -> vector<8x1024xf32>
    %82 = arith.mulf %81, %19 : vector<8x1024xf32>
    %c1009_i32_29 = arith.constant 1009 : i32
    %83 = tpu.dynamic_rotate %65 by %c1009_i32_29 dim 1 : vector<8x1024xf32>, i32 -> vector<8x1024xf32>
    %84 = arith.mulf %83, %23 : vector<8x1024xf32>
    %c1008_i32_30 = arith.constant 1008 : i32
    %85 = tpu.dynamic_rotate %65 by %c1008_i32_30 dim 1 : vector<8x1024xf32>, i32 -> vector<8x1024xf32>
    %86 = arith.mulf %85, %27 : vector<8x1024xf32>
    %c1007_i32_31 = arith.constant 1007 : i32
    %87 = tpu.dynamic_rotate %65 by %c1007_i32_31 dim 1 : vector<8x1024xf32>, i32 -> vector<8x1024xf32>
    %88 = arith.mulf %87, %31 : vector<8x1024xf32>
    %89 = tpu.concatenate %74, %76, %78, %80, %65, %82, %84, %86, %88, %36 in 0 : vector<8x1024xf32>, vector<8x1024xf32>, vector<8x1024xf32>, vector<8x1024xf32>, vector<8x1024xf32>, vector<8x1024xf32>, vector<8x1024xf32>, vector<8x1024xf32>, vector<8x1024xf32>, vector<8x1024xf32> -> vector<80x1024xf32>
    %c1_32 = arith.constant 1 : index
    %c0_33 = arith.constant 0 : index
    %c0_34 = arith.constant 0 : index
    %90 = vector.load %arg2[%c1_32, %c0_33, %c0_34] : memref<2x8x80xf32, #tpu.memory_space<vmem>>, vector<1x8x80xf32>
    %91 = vector.shape_cast %90 : vector<1x8x80xf32> to vector<8x80xf32>
    %cst_35 = arith.constant dense<0.000000e+00> : vector<8x1024xf32>
    %92 = tpu.matmul %91, %89, %cst_35 {dimension_numbers = #tpu.dot_dimension_numbers<[1], [0], [0], [1], [0, 0, 1, 1], [], []>} : vector<8x80xf32>, vector<80x1024xf32>, vector<8x1024xf32> -> vector<8x1024xf32>
    %cst_36 = arith.constant 0.000000e+00 : f32
    %93 = vector.broadcast %cst_36 : f32 to vector<8x1024xf32>
    %94 = arith.maximumf %92, %93 : vector<8x1024xf32>
    %95 = vector.extract_strided_slice %94 {offsets = [0, 0], sizes = [8, 512], strides = [1, 1]} : vector<8x1024xf32> to vector<8x512xf32>
    %96 = vector.extract_strided_slice %94 {offsets = [0, 512], sizes = [8, 512], strides = [1, 1]} : vector<8x1024xf32> to vector<8x512xf32>
    %97 = arith.subf %95, %96 : vector<8x512xf32>
    %98 = arith.mulf %97, %97 : vector<8x512xf32>
    %cst_37 = arith.constant 2.44140625E-4 : f32
    %99 = vector.broadcast %cst_37 : f32 to vector<8x512xf32>
    %100 = arith.mulf %98, %99 : vector<8x512xf32>
    %101 = arith.addf %72, %100 : vector<8x512xf32>
    %102 = vector.shape_cast %101 : vector<8x512xf32> to vector<1x8x512xf32>
    %cst_38 = arith.constant dense<0.000000e+00> : vector<1xf32>
    %103 = vector.multi_reduction <add>, %102, %cst_38 [1, 2] : vector<1x8x512xf32> to vector<1xf32>
    %104 = vector.shape_cast %103 : vector<1xf32> to vector<1x1x1xf32>
    %105 = vector.extract %104[0, 0, 0] : f32 from vector<1x1x1xf32>
    %c0_39 = arith.constant 0 : index
    %106 = memref.load %arg3[%c0_39] : memref<1xf32, #tpu.memory_space<smem>>
    memref.store %105, %arg3[%c0_39] : memref<1xf32, #tpu.memory_space<smem>>
    return
  }
}

</mosaic_0001>

<llo_original>
// kernel: spatial_loss.1
$region0: #{spatial_loss.1}
  #allocation0 [shape = 'u32[]', space=smem, size = 0x4, offset = 0x4, fixed_abs, tag = 'smem constant byte address 0x4 - core index']
  #allocation1 [shape = 'u32[144,128]{1,0:T(1,128)}', space=vmem, size = 0x12000, scoped, tag = 'internal scratch']
  %s0 = inlined_call_operand.vmem [shape: f32[8,1024], index: 0, kind: input, shape index: {}]
  %s1 = inlined_call_operand.vmem [shape: f32[9,1,1024], index: 1, kind: input, shape index: {}]
  %s2 = inlined_call_operand.vmem [shape: f32[2,8,80], index: 2, kind: input, shape index: {}]
  %s3 = inlined_call_operand.hbm [shape: f32[1], index: 3, kind: output, shape index: {}]
  %s4 = sld [smem:[#allocation0]]
  $region22: #{spatial_loss.1} parent=0
    _
  %s6 = ssub.s32 1, %s4
  %s7 = scalar_select 0, %s6, %s4
  $region1: #{spatial_loss.1} parent=0
    #allocation2 [shape = 'u8[512]{0}', space=smem, size = 0x200, scoped, tag = 'output window, operand 0, single buffered']
    #allocation3 [shape = 's32[1]{0}', space=sflag, size = 0x4, scoped, tag = 'scoped memory for spatial_loss.1']
    %8 = vsyncpa [#allocation3], 0
    // Predicated region
    $region2: #{spatial_loss.1} parent=1 // pred_check
      _
    $region3: #{spatial_loss.1} parent=1 // pred_check_branch
      %10 = sbr.rel (0) target = $region5
    $region4: #{spatial_loss.1} parent=1 // pred_region
      _
    $region5: #{spatial_loss.1} parent=1 // pred_fallthru
      _
    // Predicated region
    $region6: #{spatial_loss.1} parent=1 // pred_check
      _
    $region7: #{spatial_loss.1} parent=1 // pred_check_branch
      %12 = sbr.rel (0) target = $region9
    $region8: #{spatial_loss.1} parent=1 // pred_region
      _
    $region9: #{spatial_loss.1} parent=1 // pred_fallthru
      _
    // Predicated region
    $region10: #{spatial_loss.1} parent=1 // pred_check
      _
    $region11: #{spatial_loss.1} parent=1 // pred_check_branch
      %14 = sbr.rel (0) target = $region13
    $region12: #{spatial_loss.1} parent=1 // pred_region
      _
    $region13: #{spatial_loss.1} parent=1 // pred_fallthru
      _
    %v15 = vld [vmem:[%s1] sm:$0xff]
    %v17 = vlaneseq
    %v18 = vshrl.u32 %v17, 7
    %v19 = vsub.s32 0, %v18
    %v20 = vrot.slane %v15, %v19
    %v21 = vlaneseq
    %v22 = vshrl.u32 %v21, 7
    %v23 = vsub.s32 1, %v22
    %v24 = vrot.slane %v15, %v23
    %v25 = vlaneseq
    %v26 = vshrl.u32 %v25, 7
    %v27 = vsub.s32 2, %v26
    %v28 = vrot.slane %v15, %v27
    %v29 = vlaneseq
    %v30 = vshrl.u32 %v29, 7
    %v31 = vsub.s32 3, %v30
    %v32 = vrot.slane %v15, %v31
    %v33 = vlaneseq
    %v34 = vshrl.u32 %v33, 7
    %v35 = vsub.s32 4, %v34
    %v36 = vrot.slane %v15, %v35
    %v37 = vlaneseq
    %v38 = vshrl.u32 %v37, 7
    %v39 = vsub.s32 5, %v38
    %v40 = vrot.slane %v15, %v39
    %v41 = vlaneseq
    %v42 = vshrl.u32 %v41, 7
    %v43 = vsub.s32 6, %v42
    %v44 = vrot.slane %v15, %v43
    %v45 = vlaneseq
    %v46 = vshrl.u32 %v45, 7
    %v47 = vsub.s32 7, %v46
    %v48 = vrot.slane %v15, %v47
    %s57 = scalar_lea.vmem %s1, 8
    %v58 = vld [vmem:[%s57] sm:$0xff]
    %v60 = vlaneseq
    %v61 = vshrl.u32 %v60, 7
    %v62 = vsub.s32 0, %v61
    %v63 = vrot.slane %v58, %v62
    %v64 = vlaneseq
    %v65 = vshrl.u32 %v64, 7
    %v66 = vsub.s32 1, %v65
    %v67 = vrot.slane %v58, %v66
    %v68 = vlaneseq
    %v69 = vshrl.u32 %v68, 7
    %v70 = vsub.s32 2, %v69
    %v71 = vrot.slane %v58, %v70
    %v72 = vlaneseq
    %v73 = vshrl.u32 %v72, 7
    %v74 = vsub.s32 3, %v73
    %v75 = vrot.slane %v58, %v74
    %v76 = vlaneseq
    %v77 = vshrl.u32 %v76, 7
    %v78 = vsub.s32 4, %v77
    %v79 = vrot.slane %v58, %v78
    %v80 = vlaneseq
    %v81 = vshrl.u32 %v80, 7
    %v82 = vsub.s32 5, %v81
    %v83 = vrot.slane %v58, %v82
    %v84 = vlaneseq
    %v85 = vshrl.u32 %v84, 7
    %v86 = vsub.s32 6, %v85
    %v87 = vrot.slane %v58, %v86
    %v88 = vlaneseq
    %v89 = vshrl.u32 %v88, 7
    %v90 = vsub.s32 7, %v89
    %v91 = vrot.slane %v58, %v90
    %s100 = scalar_lea.vmem %s1, 16
    %v101 = vld [vmem:[%s100] sm:$0xff]
    %v103 = vlaneseq
    %v104 = vshrl.u32 %v103, 7
    %v105 = vsub.s32 0, %v104
    %v106 = vrot.slane %v101, %v105
    %v107 = vlaneseq
    %v108 = vshrl.u32 %v107, 7
    %v109 = vsub.s32 1, %v108
    %v110 = vrot.slane %v101, %v109
    %v111 = vlaneseq
    %v112 = vshrl.u32 %v111, 7
    %v113 = vsub.s32 2, %v112
    %v114 = vrot.slane %v101, %v113
    %v115 = vlaneseq
    %v116 = vshrl.u32 %v115, 7
    %v117 = vsub.s32 3, %v116
    %v118 = vrot.slane %v101, %v117
    %v119 = vlaneseq
    %v120 = vshrl.u32 %v119, 7
    %v121 = vsub.s32 4, %v120
    %v122 = vrot.slane %v101, %v121
    %v123 = vlaneseq
    %v124 = vshrl.u32 %v123, 7
    %v125 = vsub.s32 5, %v124
    %v126 = vrot.slane %v101, %v125
    %v127 = vlaneseq
    %v128 = vshrl.u32 %v127, 7
    %v129 = vsub.s32 6, %v128
    %v130 = vrot.slane %v101, %v129
    %v131 = vlaneseq
    %v132 = vshrl.u32 %v131, 7
    %v133 = vsub.s32 7, %v132
    %v134 = vrot.slane %v101, %v133
    %s143 = scalar_lea.vmem %s1, 24
    %v144 = vld [vmem:[%s143] sm:$0xff]
    %v146 = vlaneseq
    %v147 = vshrl.u32 %v146, 7
    %v148 = vsub.s32 0, %v147
    %v149 = vrot.slane %v144, %v148
    %v150 = vlaneseq
    %v151 = vshrl.u32 %v150, 7
    %v152 = vsub.s32 1, %v151
    %v153 = vrot.slane %v144, %v152
    %v154 = vlaneseq
    %v155 = vshrl.u32 %v154, 7
    %v156 = vsub.s32 2, %v155
    %v157 = vrot.slane %v144, %v156
    %v158 = vlaneseq
    %v159 = vshrl.u32 %v158, 7
    %v160 = vsub.s32 3, %v159
    %v161 = vrot.slane %v144, %v160
    %v162 = vlaneseq
    %v163 = vshrl.u32 %v162, 7
    %v164 = vsub.s32 4, %v163
    %v165 = vrot.slane %v144, %v164
    %v166 = vlaneseq
    %v167 = vshrl.u32 %v166, 7
    %v168 = vsub.s32 5, %v167
    %v169 = vrot.slane %v144, %v168
    %v170 = vlaneseq
    %v171 = vshrl.u32 %v170, 7
    %v172 = vsub.s32 6, %v171
    %v173 = vrot.slane %v144, %v172
    %v174 = vlaneseq
    %v175 = vshrl.u32 %v174, 7
    %v176 = vsub.s32 7, %v175
    %v177 = vrot.slane %v144, %v176
    %s186 = scalar_lea.vmem %s1, 40
    %v187 = vld [vmem:[%s186] sm:$0xff]
    %v189 = vlaneseq
    %v190 = vshrl.u32 %v189, 7
    %v191 = vsub.s32 0, %v190
    %v192 = vrot.slane %v187, %v191
    %v193 = vlaneseq
    %v194 = vshrl.u32 %v193, 7
    %v195 = vsub.s32 1, %v194
    %v196 = vrot.slane %v187, %v195
    %v197 = vlaneseq
    %v198 = vshrl.u32 %v197, 7
    %v199 = vsub.s32 2, %v198
    %v200 = vrot.slane %v187, %v199
    %v201 = vlaneseq
    %v202 = vshrl.u32 %v201, 7
    %v203 = vsub.s32 3, %v202
    %v204 = vrot.slane %v187, %v203
    %v205 = vlaneseq
    %v206 = vshrl.u32 %v205, 7
    %v207 = vsub.s32 4, %v206
    %v208 = vrot.slane %v187, %v207
    %v209 = vlaneseq
    %v210 = vshrl.u32 %v209, 7
    %v211 = vsub.s32 5, %v210
    %v212 = vrot.slane %v187, %v211
    %v213 = vlaneseq
    %v214 = vshrl.u32 %v213, 7
    %v215 = vsub.s32 6, %v214
    %v216 = vrot.slane %v187, %v215
    %v217 = vlaneseq
    %v218 = vshrl.u32 %v217, 7
    %v219 = vsub.s32 7, %v218
    %v220 = vrot.slane %v187, %v219
    %s229 = scalar_lea.vmem %s1, 48
    %v230 = vld [vmem:[%s229] sm:$0xff]
    %v232 = vlaneseq
    %v233 = vshrl.u32 %v232, 7
    %v234 = vsub.s32 0, %v233
    %v235 = vrot.slane %v230, %v234
    %v236 = vlaneseq
    %v237 = vshrl.u32 %v236, 7
    %v238 = vsub.s32 1, %v237
    %v239 = vrot.slane %v230, %v238
    %v240 = vlaneseq
    %v241 = vshrl.u32 %v240, 7
    %v242 = vsub.s32 2, %v241
    %v243 = vrot.slane %v230, %v242
    %v244 = vlaneseq
    %v245 = vshrl.u32 %v244, 7
    %v246 = vsub.s32 3, %v245
    %v247 = vrot.slane %v230, %v246
    %v248 = vlaneseq
    %v249 = vshrl.u32 %v248, 7
    %v250 = vsub.s32 4, %v249
    %v251 = vrot.slane %v230, %v250
    %v252 = vlaneseq
    %v253 = vshrl.u32 %v252, 7
    %v254 = vsub.s32 5, %v253
    %v255 = vrot.slane %v230, %v254
    %v256 = vlaneseq
    %v257 = vshrl.u32 %v256, 7
    %v258 = vsub.s32 6, %v257
    %v259 = vrot.slane %v230, %v258
    %v260 = vlaneseq
    %v261 = vshrl.u32 %v260, 7
    %v262 = vsub.s32 7, %v261
    %v263 = vrot.slane %v230, %v262
    %s272 = scalar_lea.vmem %s1, 56
    %v273 = vld [vmem:[%s272] sm:$0xff]
    %v275 = vlaneseq
    %v276 = vshrl.u32 %v275, 7
    %v277 = vsub.s32 0, %v276
    %v278 = vrot.slane %v273, %v277
    %v279 = vlaneseq
    %v280 = vshrl.u32 %v279, 7
    %v281 = vsub.s32 1, %v280
    %v282 = vrot.slane %v273, %v281
    %v283 = vlaneseq
    %v284 = vshrl.u32 %v283, 7
    %v285 = vsub.s32 2, %v284
    %v286 = vrot.slane %v273, %v285
    %v287 = vlaneseq
    %v288 = vshrl.u32 %v287, 7
    %v289 = vsub.s32 3, %v288
    %v290 = vrot.slane %v273, %v289
    %v291 = vlaneseq
    %v292 = vshrl.u32 %v291, 7
    %v293 = vsub.s32 4, %v292
    %v294 = vrot.slane %v273, %v293
    %v295 = vlaneseq
    %v296 = vshrl.u32 %v295, 7
    %v297 = vsub.s32 5, %v296
    %v298 = vrot.slane %v273, %v297
    %v299 = vlaneseq
    %v300 = vshrl.u32 %v299, 7
    %v301 = vsub.s32 6, %v300
    %v302 = vrot.slane %v273, %v301
    %v303 = vlaneseq
    %v304 = vshrl.u32 %v303, 7
    %v305 = vsub.s32 7, %v304
    %v306 = vrot.slane %v273, %v305
    %s315 = scalar_lea.vmem %s1, 64
    %v316 = vld [vmem:[%s315] sm:$0xff]
    %v318 = vlaneseq
    %v319 = vshrl.u32 %v318, 7
    %v320 = vsub.s32 0, %v319
    %v321 = vrot.slane %v316, %v320
    %v322 = vlaneseq
    %v323 = vshrl.u32 %v322, 7
    %v324 = vsub.s32 1, %v323
    %v325 = vrot.slane %v316, %v324
    %v326 = vlaneseq
    %v327 = vshrl.u32 %v326, 7
    %v328 = vsub.s32 2, %v327
    %v329 = vrot.slane %v316, %v328
    %v330 = vlaneseq
    %v331 = vshrl.u32 %v330, 7
    %v332 = vsub.s32 3, %v331
    %v333 = vrot.slane %v316, %v332
    %v334 = vlaneseq
    %v335 = vshrl.u32 %v334, 7
    %v336 = vsub.s32 4, %v335
    %v337 = vrot.slane %v316, %v336
    %v338 = vlaneseq
    %v339 = vshrl.u32 %v338, 7
    %v340 = vsub.s32 5, %v339
    %v341 = vrot.slane %v316, %v340
    %v342 = vlaneseq
    %v343 = vshrl.u32 %v342, 7
    %v344 = vsub.s32 6, %v343
    %v345 = vrot.slane %v316, %v344
    %v346 = vlaneseq
    %v347 = vshrl.u32 %v346, 7
    %v348 = vsub.s32 7, %v347
    %v349 = vrot.slane %v316, %v348
    %v358 = vlaneseq
    %v359 = vshrl.u32 %v358, 7
    %vm360 = vcmp.eq.s32.totalorder %v359, 0
    %v361 = vsel %vm360, 1, 0
    %v362 = vcvt.s32.f32 %v361
    %v363 = vld [vmem:[%s0] sm:$0xff]
    %v364 = vld [vmem:[%s0 + $0x8] sm:$0xff]
    %v365 = vld [vmem:[%s0 + $0x10] sm:$0xff]
    %v366 = vld [vmem:[%s0 + $0x18] sm:$0xff]
    %v367 = vld [vmem:[%s0 + $0x20] sm:$0xff]
    %v368 = vld [vmem:[%s0 + $0x28] sm:$0xff]
    %v369 = vld [vmem:[%s0 + $0x30] sm:$0xff]
    %v370 = vld [vmem:[%s0 + $0x38] sm:$0xff]
    %v371 = vsub.f32 %v363, %v367
    %v372 = vsub.f32 %v364, %v368
    %v373 = vsub.f32 %v365, %v369
    %v374 = vsub.f32 %v366, %v370
    %v375 = vmul.f32 %v371, %v371
    %v376 = vmul.f32 %v372, %v372
    %v377 = vmul.f32 %v373, %v373
    %v378 = vmul.f32 %v374, %v374
    %v379 = vmul.f32 %v375, 0.00048828125
    %v380 = vmul.f32 %v376, 0.00048828125
    %v381 = vmul.f32 %v377, 0.00048828125
    %v382 = vmul.f32 %v378, 0.00048828125
    %383 = vrot.lane.b32.xlu0 %v363, 17
    %v384 = vpop.permute.xlu0 %383
    %385 = vrot.lane.b32.xlu0 %v364, 17
    %v386 = vpop.permute.xlu0 %385
    %387 = vrot.lane.b32.xlu0 %v365, 17
    %v388 = vpop.permute.xlu0 %387
    %389 = vrot.lane.b32.xlu0 %v366, 17
    %v390 = vpop.permute.xlu0 %389
    %391 = vrot.lane.b32.xlu0 %v367, 17
    %v392 = vpop.permute.xlu0 %391
    %393 = vrot.lane.b32.xlu0 %v368, 17
    %v394 = vpop.permute.xlu0 %393
    %395 = vrot.lane.b32.xlu0 %v369, 17
    %v396 = vpop.permute.xlu0 %395
    %397 = vrot.lane.b32.xlu0 %v370, 17
    %v398 = vpop.permute.xlu0 %397
    %v399 = vlaneseq
    %v400 = vand.u32 %v399, 127
    %vm401 = vcmp.lt.s32.totalorder %v400, 17
    %v402 = vsel %vm401, %v396, %v398
    %v403 = vsel %vm401, %v394, %v396
    %v404 = vsel %vm401, %v392, %v394
    %v405 = vsel %vm401, %v390, %v392
    %v406 = vsel %vm401, %v388, %v390
    %v407 = vsel %vm401, %v386, %v388
    %v408 = vsel %vm401, %v384, %v386
    %v409 = vsel %vm401, %v398, %v384
    %v410 = vmul.f32 %v409, %v20
    %v411 = vmul.f32 %v408, %v24
    %v412 = vmul.f32 %v407, %v28
    %v413 = vmul.f32 %v406, %v32
    %v414 = vmul.f32 %v405, %v36
    %v415 = vmul.f32 %v404, %v40
    %v416 = vmul.f32 %v403, %v44
    %v417 = vmul.f32 %v402, %v48
    %418 = vrot.lane.b32.xlu0 %v363, 16
    %v419 = vpop.permute.xlu0 %418
    %420 = vrot.lane.b32.xlu0 %v364, 16
    %v421 = vpop.permute.xlu0 %420
    %422 = vrot.lane.b32.xlu0 %v365, 16
    %v423 = vpop.permute.xlu0 %422
    %424 = vrot.lane.b32.xlu0 %v366, 16
    %v425 = vpop.permute.xlu0 %424
    %426 = vrot.lane.b32.xlu0 %v367, 16
    %v427 = vpop.permute.xlu0 %426
    %428 = vrot.lane.b32.xlu0 %v368, 16
    %v429 = vpop.permute.xlu0 %428
    %430 = vrot.lane.b32.xlu0 %v369, 16
    %v431 = vpop.permute.xlu0 %430
    %432 = vrot.lane.b32.xlu0 %v370, 16
    %v433 = vpop.permute.xlu0 %432
    %vm434 = vcmp.lt.s32.totalorder %v400, 16
    %v435 = vsel %vm434, %v431, %v433
    %v436 = vsel %vm434, %v429, %v431
    %v437 = vsel %vm434, %v427, %v429
    %v438 = vsel %vm434, %v425, %v427
    %v439 = vsel %vm434, %v423, %v425
    %v440 = vsel %vm434, %v421, %v423
    %v441 = vsel %vm434, %v419, %v421
    %v442 = vsel %vm434, %v433, %v419
    %v443 = vmul.f32 %v442, %v63
    %v444 = vmul.f32 %v441, %v67
    %v445 = vmul.f32 %v440, %v71
    %v446 = vmul.f32 %v439, %v75
    %v447 = vmul.f32 %v438, %v79
    %v448 = vmul.f32 %v437, %v83
    %v449 = vmul.f32 %v436, %v87
    %v450 = vmul.f32 %v435, %v91
    %451 = vrot.lane.b32.xlu0 %v363, 15
    %v452 = vpop.permute.xlu0 %451
    %453 = vrot.lane.b32.xlu0 %v364, 15
    %v454 = vpop.permute.xlu0 %453
    %455 = vrot.lane.b32.xlu0 %v365, 15
    %v456 = vpop.permute.xlu0 %455
    %457 = vrot.lane.b32.xlu0 %v366, 15
    %v458 = vpop.permute.xlu0 %457
    %459 = vrot.lane.b32.xlu0 %v367, 15
    %v460 = vpop.permute.xlu0 %459
    %461 = vrot.lane.b32.xlu0 %v368, 15
    %v462 = vpop.permute.xlu0 %461
    %463 = vrot.lane.b32.xlu0 %v369, 15
    %v464 = vpop.permute.xlu0 %463
    %465 = vrot.lane.b32.xlu0 %v370, 15
    %v466 = vpop.permute.xlu0 %465
    %vm467 = vcmp.lt.s32.totalorder %v400, 15
    %v468 = vsel %vm467, %v464, %v466
    %v469 = vsel %vm467, %v462, %v464
    %v470 = vsel %vm467, %v460, %v462
    %v471 = vsel %vm467, %v458, %v460
    %v472 = vsel %vm467, %v456, %v458
    %v473 = vsel %vm467, %v454, %v456
    %v474 = vsel %vm467, %v452, %v454
    %v475 = vsel %vm467, %v466, %v452
    %v476 = vmul.f32 %v475, %v106
    %v477 = vmul.f32 %v474, %v110
    %v478 = vmul.f32 %v473, %v114
    %v479 = vmul.f32 %v472, %v118
    %v480 = vmul.f32 %v471, %v122
    %v481 = vmul.f32 %v470, %v126
    %v482 = vmul.f32 %v469, %v130
    %v483 = vmul.f32 %v468, %v134
    %484 = vrot.lane.b32.xlu0 %v363, 1
    %v485 = vpop.permute.xlu0 %484
    %486 = vrot.lane.b32.xlu0 %v364, 1
    %v487 = vpop.permute.xlu0 %486
    %488 = vrot.lane.b32.xlu0 %v365, 1
    %v489 = vpop.permute.xlu0 %488
    %490 = vrot.lane.b32.xlu0 %v366, 1
    %v491 = vpop.permute.xlu0 %490
    %492 = vrot.lane.b32.xlu0 %v367, 1
    %v493 = vpop.permute.xlu0 %492
    %494 = vrot.lane.b32.xlu0 %v368, 1
    %v495 = vpop.permute.xlu0 %494
    %496 = vrot.lane.b32.xlu0 %v369, 1
    %v497 = vpop.permute.xlu0 %496
    %498 = vrot.lane.b32.xlu0 %v370, 1
    %v499 = vpop.permute.xlu0 %498
    %vm500 = vcmp.lt.s32.totalorder %v400, 1
    %v501 = vsel %vm500, %v497, %v499
    %v502 = vsel %vm500, %v495, %v497
    %v503 = vsel %vm500, %v493, %v495
    %v504 = vsel %vm500, %v491, %v493
    %v505 = vsel %vm500, %v489, %v491
    %v506 = vsel %vm500, %v487, %v489
    %v507 = vsel %vm500, %v485, %v487
    %v508 = vsel %vm500, %v499, %v485
    %v509 = vmul.f32 %v508, %v149
    %v510 = vmul.f32 %v507, %v153
    %v511 = vmul.f32 %v506, %v157
    %v512 = vmul.f32 %v505, %v161
    %v513 = vmul.f32 %v504, %v165
    %v514 = vmul.f32 %v503, %v169
    %v515 = vmul.f32 %v502, %v173
    %v516 = vmul.f32 %v501, %v177
    %517 = vrot.lane.b32.xlu0 %v363, 127
    %v518 = vpop.permute.xlu0 %517
    %519 = vrot.lane.b32.xlu0 %v364, 127
    %v520 = vpop.permute.xlu0 %519
    %521 = vrot.lane.b32.xlu0 %v365, 127
    %v522 = vpop.permute.xlu0 %521
    %523 = vrot.lane.b32.xlu0 %v366, 127
    %v524 = vpop.permute.xlu0 %523
    %525 = vrot.lane.b32.xlu0 %v367, 127
    %v526 = vpop.permute.xlu0 %525
    %527 = vrot.lane.b32.xlu0 %v368, 127
    %v528 = vpop.permute.xlu0 %527
    %529 = vrot.lane.b32.xlu0 %v369, 127
    %v530 = vpop.permute.xlu0 %529
    %531 = vrot.lane.b32.xlu0 %v370, 127
    %v532 = vpop.permute.xlu0 %531
    %vm533 = vcmp.lt.s32.totalorder %v400, 127
    %v534 = vsel %vm533, %v530, %v532
    %v535 = vsel %vm533, %v528, %v530
    %v536 = vsel %vm533, %v526, %v528
    %v537 = vsel %vm533, %v524, %v526
    %v538 = vsel %vm533, %v522, %v524
    %v539 = vsel %vm533, %v520, %v522
    %v540 = vsel %vm533, %v518, %v520
    %v541 = vsel %vm533, %v532, %v518
    %v542 = vmul.f32 %v540, %v192
    %v543 = vmul.f32 %v539, %v196
    %v544 = vmul.f32 %v538, %v200
    %v545 = vmul.f32 %v537, %v204
    %v546 = vmul.f32 %v536, %v208
    %v547 = vmul.f32 %v535, %v212
    %v548 = vmul.f32 %v534, %v216
    %v549 = vmul.f32 %v541, %v220
    %550 = vrot.lane.b32.xlu0 %v363, 113
    %v551 = vpop.permute.xlu0 %550
    %552 = vrot.lane.b32.xlu0 %v364, 113
    %v553 = vpop.permute.xlu0 %552
    %554 = vrot.lane.b32.xlu0 %v365, 113
    %v555 = vpop.permute.xlu0 %554
    %556 = vrot.lane.b32.xlu0 %v366, 113
    %v557 = vpop.permute.xlu0 %556
    %558 = vrot.lane.b32.xlu0 %v367, 113
    %v559 = vpop.permute.xlu0 %558
    %560 = vrot.lane.b32.xlu0 %v368, 113
    %v561 = vpop.permute.xlu0 %560
    %562 = vrot.lane.b32.xlu0 %v369, 113
    %v563 = vpop.permute.xlu0 %562
    %564 = vrot.lane.b32.xlu0 %v370, 113
    %v565 = vpop.permute.xlu0 %564
    %vm566 = vcmp.lt.s32.totalorder %v400, 113
    %v567 = vsel %vm566, %v563, %v565
    %v568 = vsel %vm566, %v561, %v563
    %v569 = vsel %vm566, %v559, %v561
    %v570 = vsel %vm566, %v557, %v559
    %v571 = vsel %vm566, %v555, %v557
    %v572 = vsel %vm566, %v553, %v555
    %v573 = vsel %vm566, %v551, %v553
    %v574 = vsel %vm566, %v565, %v551
    %v575 = vmul.f32 %v573, %v235
    %v576 = vmul.f32 %v572, %v239
    %v577 = vmul.f32 %v571, %v243
    %v578 = vmul.f32 %v570, %v247
    %v579 = vmul.f32 %v569, %v251
    %v580 = vmul.f32 %v568, %v255
    %v581 = vmul.f32 %v567, %v259
    %v582 = vmul.f32 %v574, %v263
    %583 = vrot.lane.b32.xlu0 %v363, 112
    %v584 = vpop.permute.xlu0 %583
    %585 = vrot.lane.b32.xlu0 %v364, 112
    %v586 = vpop.permute.xlu0 %585
    %587 = vrot.lane.b32.xlu0 %v365, 112
    %v588 = vpop.permute.xlu0 %587
    %589 = vrot.lane.b32.xlu0 %v366, 112
    %v590 = vpop.permute.xlu0 %589
    %591 = vrot.lane.b32.xlu0 %v367, 112
    %v592 = vpop.permute.xlu0 %591
    %593 = vrot.lane.b32.xlu0 %v368, 112
    %v594 = vpop.permute.xlu0 %593
    %595 = vrot.lane.b32.xlu0 %v369, 112
    %v596 = vpop.permute.xlu0 %595
    %597 = vrot.lane.b32.xlu0 %v370, 112
    %v598 = vpop.permute.xlu0 %597
    %vm599 = vcmp.lt.s32.totalorder %v400, 112
    %v600 = vsel %vm599, %v596, %v598
    %v601 = vsel %vm599, %v594, %v596
    %v602 = vsel %vm599, %v592, %v594
    %v603 = vsel %vm599, %v590, %v592
    %v604 = vsel %vm599, %v588, %v590
    %v605 = vsel %vm599, %v586, %v588
    %v606 = vsel %vm599, %v584, %v586
    %v607 = vsel %vm599, %v598, %v584
    %v608 = vmul.f32 %v606, %v278
    %v609 = vmul.f32 %v605, %v282
    %v610 = vmul.f32 %v604, %v286
    %v611 = vmul.f32 %v603, %v290
    %v612 = vmul.f32 %v602, %v294
    %v613 = vmul.f32 %v601, %v298
    %v614 = vmul.f32 %v600, %v302
    %v615 = vmul.f32 %v607, %v306
    %616 = vrot.lane.b32.xlu0 %v363, 111
    %v617 = vpop.permute.xlu0 %616
    %618 = vrot.lane.b32.xlu0 %v364, 111
    %v619 = vpop.permute.xlu0 %618
    %620 = vrot.lane.b32.xlu0 %v365, 111
    %v621 = vpop.permute.xlu0 %620
    %622 = vrot.lane.b32.xlu0 %v366, 111
    %v623 = vpop.permute.xlu0 %622
    %624 = vrot.lane.b32.xlu0 %v367, 111
    %v625 = vpop.permute.xlu0 %624
    %626 = vrot.lane.b32.xlu0 %v368, 111
    %v627 = vpop.permute.xlu0 %626
    %628 = vrot.lane.b32.xlu0 %v369, 111
    %v629 = vpop.permute.xlu0 %628
    %630 = vrot.lane.b32.xlu0 %v370, 111
    %v631 = vpop.permute.xlu0 %630
    %vm632 = vcmp.lt.s32.totalorder %v400, 111
    %v633 = vsel %vm632, %v629, %v631
    %v634 = vsel %vm632, %v627, %v629
    %v635 = vsel %vm632, %v625, %v627
    %v636 = vsel %vm632, %v623, %v625
    %v637 = vsel %vm632, %v621, %v623
    %v638 = vsel %vm632, %v619, %v621
    %v639 = vsel %vm632, %v617, %v619
    %v640 = vsel %vm632, %v631, %v617
    %v641 = vmul.f32 %v639, %v321
    %v642 = vmul.f32 %v638, %v325
    %v643 = vmul.f32 %v637, %v329
    %v644 = vmul.f32 %v636, %v333
    %v645 = vmul.f32 %v635, %v337
    %v646 = vmul.f32 %v634, %v341
    %v647 = vmul.f32 %v633, %v345
    %v648 = vmul.f32 %v640, %v349
    %v649 = vld [vmem:[%s2] sm:$0xff]
    %vm650 = vcmask 654336
    %v652 = vsel %vm650, %v649, 0
    %654 = vmatprep.subr.mxu0 0.0
    %655 = vmatpush1.msra.mxu0 0.0
    %656 = vmatprep.subr.mxu0 0.0
    %657 = vmatpush1.msra.mxu0 0.0
    %658 = vmatprep.subr.mxu0 0.0
    %659 = vmatpush1.msra.mxu0 0.0
    %660 = vmatprep.subr.mxu0 0.0
    %661 = vmatpush1.msra.mxu0 0.0
    %662 = vmatprep.subr.mxu0 0.0
    %663 = vmatpush1.msra.mxu0 0.0
    %664 = vmatprep.subr.mxu0 0.0
    %665 = vmatpush1.msra.mxu0 0.0
    %666 = vmatprep.subr.mxu0 %v362
    %667 = vmatpush1.msra.mxu0 %v362
    %668 = vmatprep.subr.mxu0 %v642
    %669 = vmatpush1.msra.mxu0 %v641
    %670 = vmatprep.subr.mxu0 %v609
    %671 = vmatpush1.msra.mxu0 %v608
    %672 = vmatprep.subr.mxu0 %v576
    %673 = vmatpush1.msra.mxu0 %v575
    %674 = vmatprep.subr.mxu0 %v543
    %675 = vmatpush1.msra.mxu0 %v542
    %676 = vmatprep.subr.mxu0 %v364
    %677 = vmatpush1.msra.mxu0 %v363
    %678 = vmatprep.subr.mxu0 %v510
    %679 = vmatpush1.msra.mxu0 %v509
    %680 = vmatprep.subr.mxu0 %v477
    %681 = vmatpush1.msra.mxu0 %v476
    %682 = vmatprep.subr.mxu0 %v444
    %683 = vmatpush1.msra.mxu0 %v443
    %684 = vmatprep.subr.mxu0 %v411
    %685 = vmatpush1.msra.mxu0 %v410
    %686 = vmatprep.subr.mxu0 0.0
    %687 = vmatpush2.msra.mxu0 0.0
    %688 = vmatprep.subr.mxu0 0.0
    %689 = vmatpush2.msra.mxu0 0.0
    %690 = vmatprep.subr.mxu0 0.0
    %691 = vmatpush2.msra.mxu0 0.0
    %692 = vmatprep.subr.mxu0 0.0
    %693 = vmatpush2.msra.mxu0 0.0
    %694 = vmatprep.subr.mxu0 0.0
    %695 = vmatpush2.msra.mxu0 0.0
    %696 = vmatprep.subr.mxu0 0.0
    %697 = vmatpush2.msra.mxu0 0.0
    %698 = vmatprep.subr.mxu0 0.0
    %699 = vmatpush2.msra.mxu0 0.0
    %700 = vmatprep.subr.mxu0 0.0
    %701 = vmatpush2.msra.mxu0 0.0
    %702 = vmatprep.subr.mxu0 0.0
    %703 = vmatpush2.msra.mxu0 0.0
    %704 = vmatprep.subr.mxu0 0.0
    %705 = vmatpush2.msra.mxu0 0.0
    %706 = vmatprep.subr.mxu0 0.0
    %707 = vmatpush2.msra.mxu0 0.0
    %708 = vmatprep.subr.mxu0 0.0
    %709 = vmatpush2.msra.mxu0 0.0
    %710 = vmatprep.subr.mxu0 0.0
    %711 = vmatpush2.msra.mxu0 0.0
    %712 = vmatprep.subr.mxu0 0.0
    %713 = vmatpush2.msra.mxu0 0.0
    %714 = vmatprep.subr.mxu0 0.0
    %715 = vmatpush2.msra.mxu0 0.0
    %716 = vmatprep.subr.mxu0 0.0
    %717 = vmatpush2.msra.mxu0 0.0
    %718 = vmatprep.mubr.f32.mxu0 0.0
    %719 = vmatmul.mubr.f32.gmra.mxu0 %v652
    %v720 = vpop.f32.mrf.mxu0
    %v721 = vadd.f32 0.0, %v720
    %v722 = vpop.f32.mrf.mxu0
    %v723 = vadd.f32 0.0, %v722
    %724 = vdwg.mxu0
    %725 = vmatprep.subr.mxu0 0.0
    %726 = vmatpush1.msra.mxu0 0.0
    %727 = vmatprep.subr.mxu0 0.0
    %728 = vmatpush1.msra.mxu0 0.0
    %729 = vmatprep.subr.mxu0 0.0
    %730 = vmatpush1.msra.mxu0 0.0
    %731 = vmatprep.subr.mxu0 0.0
    %732 = vmatpush1.msra.mxu0 0.0
    %733 = vmatprep.subr.mxu0 0.0
    %734 = vmatpush1.msra.mxu0 0.0
    %735 = vmatprep.subr.mxu0 0.0
    %736 = vmatpush1.msra.mxu0 0.0
    %737 = vmatprep.subr.mxu0 %v362
    %738 = vmatpush1.msra.mxu0 %v362
    %739 = vmatprep.subr.mxu0 %v644
    %740 = vmatpush1.msra.mxu0 %v643
    %741 = vmatprep.subr.mxu0 %v611
    %742 = vmatpush1.msra.mxu0 %v610
    %743 = vmatprep.subr.mxu0 %v578
    %744 = vmatpush1.msra.mxu0 %v577
    %745 = vmatprep.subr.mxu0 %v545
    %746 = vmatpush1.msra.mxu0 %v544
    %747 = vmatprep.subr.mxu0 %v366
    %748 = vmatpush1.msra.mxu0 %v365
    %749 = vmatprep.subr.mxu0 %v512
    %750 = vmatpush1.msra.mxu0 %v511
    %751 = vmatprep.subr.mxu0 %v479
    %752 = vmatpush1.msra.mxu0 %v478
    %753 = vmatprep.subr.mxu0 %v446
    %754 = vmatpush1.msra.mxu0 %v445
    %755 = vmatprep.subr.mxu0 %v413
    %756 = vmatpush1.msra.mxu0 %v412
    %757 = vmatprep.subr.mxu0 0.0
    %758 = vmatpush2.msra.mxu0 0.0
    %759 = vmatprep.subr.mxu0 0.0
    %760 = vmatpush2.msra.mxu0 0.0
    %761 = vmatprep.subr.mxu0 0.0
    %762 = vmatpush2.msra.mxu0 0.0
    %763 = vmatprep.subr.mxu0 0.0
    %764 = vmatpush2.msra.mxu0 0.0
    %765 = vmatprep.subr.mxu0 0.0
    %766 = vmatpush2.msra.mxu0 0.0
    %767 = vmatprep.subr.mxu0 0.0
    %768 = vmatpush2.msra.mxu0 0.0
    %769 = vmatprep.subr.mxu0 0.0
    %770 = vmatpush2.msra.mxu0 0.0
    %771 = vmatprep.subr.mxu0 0.0
    %772 = vmatpush2.msra.mxu0 0.0
    %773 = vmatprep.subr.mxu0 0.0
    %774 = vmatpush2.msra.mxu0 0.0
    %775 = vmatprep.subr.mxu0 0.0
    %776 = vmatpush2.msra.mxu0 0.0
    %777 = vmatprep.subr.mxu0 0.0
    %778 = vmatpush2.msra.mxu0 0.0
    %779 = vmatprep.subr.mxu0 0.0
    %780 = vmatpush2.msra.mxu0 0.0
    %781 = vmatprep.subr.mxu0 0.0
    %782 = vmatpush2.msra.mxu0 0.0
    %783 = vmatprep.subr.mxu0 0.0
    %784 = vmatpush2.msra.mxu0 0.0
    %785 = vmatprep.subr.mxu0 0.0
    %786 = vmatpush2.msra.mxu0 0.0
    %787 = vmatprep.subr.mxu0 0.0
    %788 = vmatpush2.msra.mxu0 0.0
    %789 = vmatprep.mubr.f32.mxu0 0.0
    %790 = vmatmul.mubr.f32.gmra.mxu0 %v652
    %v791 = vpop.f32.mrf.mxu0
    %v792 = vadd.f32 0.0, %v791
    %v793 = vpop.f32.mrf.mxu0
    %v794 = vadd.f32 0.0, %v793
    %795 = vdwg.mxu0
    %796 = vmatprep.subr.mxu0 0.0
    %797 = vmatpush1.msra.mxu0 0.0
    %798 = vmatprep.subr.mxu0 0.0
    %799 = vmatpush1.msra.mxu0 0.0
    %800 = vmatprep.subr.mxu0 0.0
    %801 = vmatpush1.msra.mxu0 0.0
    %802 = vmatprep.subr.mxu0 0.0
    %803 = vmatpush1.msra.mxu0 0.0
    %804 = vmatprep.subr.mxu0 0.0
    %805 = vmatpush1.msra.mxu0 0.0
    %806 = vmatprep.subr.mxu0 0.0
    %807 = vmatpush1.msra.mxu0 0.0
    %808 = vmatprep.subr.mxu0 %v362
    %809 = vmatpush1.msra.mxu0 %v362
    %810 = vmatprep.subr.mxu0 %v646
    %811 = vmatpush1.msra.mxu0 %v645
    %812 = vmatprep.subr.mxu0 %v613
    %813 = vmatpush1.msra.mxu0 %v612
    %814 = vmatprep.subr.mxu0 %v580
    %815 = vmatpush1.msra.mxu0 %v579
    %816 = vmatprep.subr.mxu0 %v547
    %817 = vmatpush1.msra.mxu0 %v546
    %818 = vmatprep.subr.mxu0 %v368
    %819 = vmatpush1.msra.mxu0 %v367
    %820 = vmatprep.subr.mxu0 %v514
    %821 = vmatpush1.msra.mxu0 %v513
    %822 = vmatprep.subr.mxu0 %v481
    %823 = vmatpush1.msra.mxu0 %v480
    %824 = vmatprep.subr.mxu0 %v448
    %825 = vmatpush1.msra.mxu0 %v447
    %826 = vmatprep.subr.mxu0 %v415
    %827 = vmatpush1.msra.mxu0 %v414
    %828 = vmatprep.subr.mxu0 0.0
    %829 = vmatpush2.msra.mxu0 0.0
    %830 = vmatprep.subr.mxu0 0.0
    %831 = vmatpush2.msra.mxu0 0.0
    %832 = vmatprep.subr.mxu0 0.0
    %833 = vmatpush2.msra.mxu0 0.0
    %834 = vmatprep.subr.mxu0 0.0
    %835 = vmatpush2.msra.mxu0 0.0
    %836 = vmatprep.subr.mxu0 0.0
    %837 = vmatpush2.msra.mxu0 0.0
    %838 = vmatprep.subr.mxu0 0.0
    %839 = vmatpush2.msra.mxu0 0.0
    %840 = vmatprep.subr.mxu0 0.0
    %841 = vmatpush2.msra.mxu0 0.0
    %842 = vmatprep.subr.mxu0 0.0
    %843 = vmatpush2.msra.mxu0 0.0
    %844 = vmatprep.subr.mxu0 0.0
    %845 = vmatpush2.msra.mxu0 0.0
    %846 = vmatprep.subr.mxu0 0.0
    %847 = vmatpush2.msra.mxu0 0.0
    %848 = vmatprep.subr.mxu0 0.0
    %849 = vmatpush2.msra.mxu0 0.0
    %850 = vmatprep.subr.mxu0 0.0
    %851 = vmatpush2.msra.mxu0 0.0
    %852 = vmatprep.subr.mxu0 0.0
    %853 = vmatpush2.msra.mxu0 0.0
    %854 = vmatprep.subr.mxu0 0.0
    %855 = vmatpush2.msra.mxu0 0.0
    %856 = vmatprep.subr.mxu0 0.0
    %857 = vmatpush2.msra.mxu0 0.0
    %858 = vmatprep.subr.mxu0 0.0
    %859 = vmatpush2.msra.mxu0 0.0
    %860 = vmatprep.mubr.f32.mxu0 0.0
    %861 = vmatmul.mubr.f32.gmra.mxu0 %v652
    %v862 = vpop.f32.mrf.mxu0
    %v863 = vadd.f32 0.0, %v862
    %v864 = vpop.f32.mrf.mxu0
    %v865 = vadd.f32 0.0, %v864
    %866 = vdwg.mxu0
    %867 = vmatprep.subr.mxu0 0.0
    %868 = vmatpush1.msra.mxu0 0.0
    %869 = vmatprep.subr.mxu0 0.0
    %870 = vmatpush1.msra.mxu0 0.0
    %871 = vmatprep.subr.mxu0 0.0
    %872 = vmatpush1.msra.mxu0 0.0
    %873 = vmatprep.subr.mxu0 0.0
    %874 = vmatpush1.msra.mxu0 0.0
    %875 = vmatprep.subr.mxu0 0.0
    %876 = vmatpush1.msra.mxu0 0.0
    %877 = vmatprep.subr.mxu0 0.0
    %878 = vmatpush1.msra.mxu0 0.0
    %879 = vmatprep.subr.mxu0 %v362
    %880 = vmatpush1.msra.mxu0 %v362
    %881 = vmatprep.subr.mxu0 %v648
    %882 = vmatpush1.msra.mxu0 %v647
    %883 = vmatprep.subr.mxu0 %v615
    %884 = vmatpush1.msra.mxu0 %v614
    %885 = vmatprep.subr.mxu0 %v582
    %886 = vmatpush1.msra.mxu0 %v581
    %887 = vmatprep.subr.mxu0 %v549
    %888 = vmatpush1.msra.mxu0 %v548
    %889 = vmatprep.subr.mxu0 %v370
    %890 = vmatpush1.msra.mxu0 %v369
    %891 = vmatprep.subr.mxu0 %v516
    %892 = vmatpush1.msra.mxu0 %v515
    %893 = vmatprep.subr.mxu0 %v483
    %894 = vmatpush1.msra.mxu0 %v482
    %895 = vmatprep.subr.mxu0 %v450
    %896 = vmatpush1.msra.mxu0 %v449
    %897 = vmatprep.subr.mxu0 %v417
    %898 = vmatpush1.msra.mxu0 %v416
    %899 = vmatprep.subr.mxu0 0.0
    %900 = vmatpush2.msra.mxu0 0.0
    %901 = vmatprep.subr.mxu0 0.0
    %902 = vmatpush2.msra.mxu0 0.0
    %903 = vmatprep.subr.mxu0 0.0
    %904 = vmatpush2.msra.mxu0 0.0
    %905 = vmatprep.subr.mxu0 0.0
    %906 = vmatpush2.msra.mxu0 0.0
    %907 = vmatprep.subr.mxu0 0.0
    %908 = vmatpush2.msra.mxu0 0.0
    %909 = vmatprep.subr.mxu0 0.0
    %910 = vmatpush2.msra.mxu0 0.0
    %911 = vmatprep.subr.mxu0 0.0
    %912 = vmatpush2.msra.mxu0 0.0
    %913 = vmatprep.subr.mxu0 0.0
    %914 = vmatpush2.msra.mxu0 0.0
    %915 = vmatprep.subr.mxu0 0.0
    %916 = vmatpush2.msra.mxu0 0.0
    %917 = vmatprep.subr.mxu0 0.0
    %918 = vmatpush2.msra.mxu0 0.0
    %919 = vmatprep.subr.mxu0 0.0
    %920 = vmatpush2.msra.mxu0 0.0
    %921 = vmatprep.subr.mxu0 0.0
    %922 = vmatpush2.msra.mxu0 0.0
    %923 = vmatprep.subr.mxu0 0.0
    %924 = vmatpush2.msra.mxu0 0.0
    %925 = vmatprep.subr.mxu0 0.0
    %926 = vmatpush2.msra.mxu0 0.0
    %927 = vmatprep.subr.mxu0 0.0
    %928 = vmatpush2.msra.mxu0 0.0
    %929 = vmatprep.subr.mxu0 0.0
    %930 = vmatpush2.msra.mxu0 0.0
    %931 = vmatprep.mubr.f32.mxu0 0.0
    %932 = vmatmul.mubr.f32.gmra.mxu0 %v652
    %v933 = vpop.f32.mrf.mxu0
    %v934 = vadd.f32 0.0, %v933
    %v935 = vpop.f32.mrf.mxu0
    %v936 = vadd.f32 0.0, %v935
    %937 = vdwg.mxu0
    %v938 = vmax.f32 %v721, 0.0
    %v939 = vmax.f32 %v723, 0.0
    %v940 = vmax.f32 %v792, 0.0
    %v941 = vmax.f32 %v794, 0.0
    %v942 = vmax.f32 %v863, 0.0
    %v943 = vmax.f32 %v865, 0.0
    %v944 = vmax.f32 %v934, 0.0
    %v945 = vmax.f32 %v936, 0.0
    %v946 = vsub.f32 %v938, %v942
    %v947 = vsub.f32 %v939, %v943
    %v948 = vsub.f32 %v940, %v944
    %v949 = vsub.f32 %v941, %v945
    %v950 = vmul.f32 %v946, %v946
    %v951 = vmul.f32 %v947, %v947
    %v952 = vmul.f32 %v948, %v948
    %v953 = vmul.f32 %v949, %v949
    %v954 = vmul.f32 %v950, 0.00024414063
    %v955 = vmul.f32 %v951, 0.00024414063
    %v956 = vmul.f32 %v952, 0.00024414063
    %v957 = vmul.f32 %v953, 0.00024414063
    %v958 = vadd.f32 %v379, %v954
    %v959 = vadd.f32 %v380, %v955
    %v960 = vadd.f32 %v381, %v956
    %v961 = vadd.f32 %v382, %v957
    %962 = vrot.lane.b32.xlu0 %v938, 17
    %v963 = vpop.permute.xlu0 %962
    %964 = vrot.lane.b32.xlu0 %v939, 17
    %v965 = vpop.permute.xlu0 %964
    %966 = vrot.lane.b32.xlu0 %v940, 17
    %v967 = vpop.permute.xlu0 %966
    %968 = vrot.lane.b32.xlu0 %v941, 17
    %v969 = vpop.permute.xlu0 %968
    %970 = vrot.lane.b32.xlu0 %v942, 17
    %v971 = vpop.permute.xlu0 %970
    %972 = vrot.lane.b32.xlu0 %v943, 17
    %v973 = vpop.permute.xlu0 %972
    %974 = vrot.lane.b32.xlu0 %v944, 17
    %v975 = vpop.permute.xlu0 %974
    %976 = vrot.lane.b32.xlu0 %v945, 17
    %v977 = vpop.permute.xlu0 %976
    %v978 = vsel %vm401, %v975, %v977
    %v979 = vsel %vm401, %v973, %v975
    %v980 = vsel %vm401, %v971, %v973
    %v981 = vsel %vm401, %v969, %v971
    %v982 = vsel %vm401, %v967, %v969
    %v983 = vsel %vm401, %v965, %v967
    %v984 = vsel %vm401, %v963, %v965
    %v985 = vsel %vm401, %v977, %v963
    %v986 = vmul.f32 %v985, %v20
    %v987 = vmul.f32 %v984, %v24
    %v988 = vmul.f32 %v983, %v28
    %v989 = vmul.f32 %v982, %v32
    %v990 = vmul.f32 %v981, %v36
    %v991 = vmul.f32 %v980, %v40
    %v992 = vmul.f32 %v979, %v44
    %v993 = vmul.f32 %v978, %v48
    %994 = vrot.lane.b32.xlu0 %v938, 16
    %v995 = vpop.permute.xlu0 %994
    %996 = vrot.lane.b32.xlu0 %v939, 16
    %v997 = vpop.permute.xlu0 %996
    %998 = vrot.lane.b32.xlu0 %v940, 16
    %v999 = vpop.permute.xlu0 %998
    %1000 = vrot.lane.b32.xlu0 %v941, 16
    %v1001 = vpop.permute.xlu0 %1000
    %1002 = vrot.lane.b32.xlu0 %v942, 16
    %v1003 = vpop.permute.xlu0 %1002
    %1004 = vrot.lane.b32.xlu0 %v943, 16
    %v1005 = vpop.permute.xlu0 %1004
    %1006 = vrot.lane.b32.xlu0 %v944, 16
    %v1007 = vpop.permute.xlu0 %1006
    %1008 = vrot.lane.b32.xlu0 %v945, 16
    %v1009 = vpop.permute.xlu0 %1008
    %v1010 = vsel %vm434, %v1007, %v1009
    %v1011 = vsel %vm434, %v1005, %v1007
    %v1012 = vsel %vm434, %v1003, %v1005
    %v1013 = vsel %vm434, %v1001, %v1003
    %v1014 = vsel %vm434, %v999, %v1001
    %v1015 = vsel %vm434, %v997, %v999
    %v1016 = vsel %vm434, %v995, %v997
    %v1017 = vsel %vm434, %v1009, %v995
    %v1018 = vmul.f32 %v1017, %v63
    %v1019 = vmul.f32 %v1016, %v67
    %v1020 = vmul.f32 %v1015, %v71
    %v1021 = vmul.f32 %v1014, %v75
    %v1022 = vmul.f32 %v1013, %v79
    %v1023 = vmul.f32 %v1012, %v83
    %v1024 = vmul.f32 %v1011, %v87
    %v1025 = vmul.f32 %v1010, %v91
    %1026 = vrot.lane.b32.xlu0 %v938, 15
    %v1027 = vpop.permute.xlu0 %1026
    %1028 = vrot.lane.b32.xlu0 %v939, 15
    %v1029 = vpop.permute.xlu0 %1028
    %1030 = vrot.lane.b32.xlu0 %v940, 15
    %v1031 = vpop.permute.xlu0 %1030
    %1032 = vrot.lane.b32.xlu0 %v941, 15
    %v1033 = vpop.permute.xlu0 %1032
    %1034 = vrot.lane.b32.xlu0 %v942, 15
    %v1035 = vpop.permute.xlu0 %1034
    %1036 = vrot.lane.b32.xlu0 %v943, 15
    %v1037 = vpop.permute.xlu0 %1036
    %1038 = vrot.lane.b32.xlu0 %v944, 15
    %v1039 = vpop.permute.xlu0 %1038
    %1040 = vrot.lane.b32.xlu0 %v945, 15
    %v1041 = vpop.permute.xlu0 %1040
    %v1042 = vsel %vm467, %v1039, %v1041
    %v1043 = vsel %vm467, %v1037, %v1039
    %v1044 = vsel %vm467, %v1035, %v1037
    %v1045 = vsel %vm467, %v1033, %v1035
    %v1046 = vsel %vm467, %v1031, %v1033
    %v1047 = vsel %vm467, %v1029, %v1031
    %v1048 = vsel %vm467, %v1027, %v1029
    %v1049 = vsel %vm467, %v1041, %v1027
    %v1050 = vmul.f32 %v1049, %v106
    %v1051 = vmul.f32 %v1048, %v110
    %v1052 = vmul.f32 %v1047, %v114
    %v1053 = vmul.f32 %v1046, %v118
    %v1054 = vmul.f32 %v1045, %v122
    %v1055 = vmul.f32 %v1044, %v126
    %v1056 = vmul.f32 %v1043, %v130
    %v1057 = vmul.f32 %v1042, %v134
    %1058 = vrot.lane.b32.xlu0 %v938, 1
    %v1059 = vpop.permute.xlu0 %1058
    %1060 = vrot.lane.b32.xlu0 %v939, 1
    %v1061 = vpop.permute.xlu0 %1060
    %1062 = vrot.lane.b32.xlu0 %v940, 1
    %v1063 = vpop.permute.xlu0 %1062
    %1064 = vrot.lane.b32.xlu0 %v941, 1
    %v1065 = vpop.permute.xlu0 %1064
    %1066 = vrot.lane.b32.xlu0 %v942, 1
    %v1067 = vpop.permute.xlu0 %1066
    %1068 = vrot.lane.b32.xlu0 %v943, 1
    %v1069 = vpop.permute.xlu0 %1068
    %1070 = vrot.lane.b32.xlu0 %v944, 1
    %v1071 = vpop.permute.xlu0 %1070
    %1072 = vrot.lane.b32.xlu0 %v945, 1
    %v1073 = vpop.permute.xlu0 %1072
    %v1074 = vsel %vm500, %v1071, %v1073
    %v1075 = vsel %vm500, %v1069, %v1071
    %v1076 = vsel %vm500, %v1067, %v1069
    %v1077 = vsel %vm500, %v1065, %v1067
    %v1078 = vsel %vm500, %v1063, %v1065
    %v1079 = vsel %vm500, %v1061, %v1063
    %v1080 = vsel %vm500, %v1059, %v1061
    %v1081 = vsel %vm500, %v1073, %v1059
    %v1082 = vmul.f32 %v1081, %v149
    %v1083 = vmul.f32 %v1080, %v153
    %v1084 = vmul.f32 %v1079, %v157
    %v1085 = vmul.f32 %v1078, %v161
    %v1086 = vmul.f32 %v1077, %v165
    %v1087 = vmul.f32 %v1076, %v169
    %v1088 = vmul.f32 %v1075, %v173
    %v1089 = vmul.f32 %v1074, %v177
    %1090 = vrot.lane.b32.xlu0 %v938, 127
    %v1091 = vpop.permute.xlu0 %1090
    %1092 = vrot.lane.b32.xlu0 %v939, 127
    %v1093 = vpop.permute.xlu0 %1092
    %1094 = vrot.lane.b32.xlu0 %v940, 127
    %v1095 = vpop.permute.xlu0 %1094
    %1096 = vrot.lane.b32.xlu0 %v941, 127
    %v1097 = vpop.permute.xlu0 %1096
    %1098 = vrot.lane.b32.xlu0 %v942, 127
    %v1099 = vpop.permute.xlu0 %1098
    %1100 = vrot.lane.b32.xlu0 %v943, 127
    %v1101 = vpop.permute.xlu0 %1100
    %1102 = vrot.lane.b32.xlu0 %v944, 127
    %v1103 = vpop.permute.xlu0 %1102
    %1104 = vrot.lane.b32.xlu0 %v945, 127
    %v1105 = vpop.permute.xlu0 %1104
    %v1106 = vsel %vm533, %v1103, %v1105
    %v1107 = vsel %vm533, %v1101, %v1103
    %v1108 = vsel %vm533, %v1099, %v1101
    %v1109 = vsel %vm533, %v1097, %v1099
    %v1110 = vsel %vm533, %v1095, %v1097
    %v1111 = vsel %vm533, %v1093, %v1095
    %v1112 = vsel %vm533, %v1091, %v1093
    %v1113 = vsel %vm533, %v1105, %v1091
    %v1114 = vmul.f32 %v1112, %v192
    %v1115 = vmul.f32 %v1111, %v196
    %v1116 = vmul.f32 %v1110, %v200
    %v1117 = vmul.f32 %v1109, %v204
    %v1118 = vmul.f32 %v1108, %v208
    %v1119 = vmul.f32 %v1107, %v212
    %v1120 = vmul.f32 %v1106, %v216
    %v1121 = vmul.f32 %v1113, %v220
    %1122 = vrot.lane.b32.xlu0 %v938, 113
    %v1123 = vpop.permute.xlu0 %1122
    %1124 = vrot.lane.b32.xlu0 %v939, 113
    %v1125 = vpop.permute.xlu0 %1124
    %1126 = vrot.lane.b32.xlu0 %v940, 113
    %v1127 = vpop.permute.xlu0 %1126
    %1128 = vrot.lane.b32.xlu0 %v941, 113
    %v1129 = vpop.permute.xlu0 %1128
    %1130 = vrot.lane.b32.xlu0 %v942, 113
    %v1131 = vpop.permute.xlu0 %1130
    %1132 = vrot.lane.b32.xlu0 %v943, 113
    %v1133 = vpop.permute.xlu0 %1132
    %1134 = vrot.lane.b32.xlu0 %v944, 113
    %v1135 = vpop.permute.xlu0 %1134
    %1136 = vrot.lane.b32.xlu0 %v945, 113
    %v1137 = vpop.permute.xlu0 %1136
    %v1138 = vsel %vm566, %v1135, %v1137
    %v1139 = vsel %vm566, %v1133, %v1135
    %v1140 = vsel %vm566, %v1131, %v1133
    %v1141 = vsel %vm566, %v1129, %v1131
    %v1142 = vsel %vm566, %v1127, %v1129
    %v1143 = vsel %vm566, %v1125, %v1127
    %v1144 = vsel %vm566, %v1123, %v1125
    %v1145 = vsel %vm566, %v1137, %v1123
    %v1146 = vmul.f32 %v1144, %v235
    %v1147 = vmul.f32 %v1143, %v239
    %v1148 = vmul.f32 %v1142, %v243
    %v1149 = vmul.f32 %v1141, %v247
    %v1150 = vmul.f32 %v1140, %v251
    %v1151 = vmul.f32 %v1139, %v255
    %v1152 = vmul.f32 %v1138, %v259
    %v1153 = vmul.f32 %v1145, %v263
    %1154 = vrot.lane.b32.xlu0 %v938, 112
    %v1155 = vpop.permute.xlu0 %1154
    %1156 = vrot.lane.b32.xlu0 %v939, 112
    %v1157 = vpop.permute.xlu0 %1156
    %1158 = vrot.lane.b32.xlu0 %v940, 112
    %v1159 = vpop.permute.xlu0 %1158
    %1160 = vrot.lane.b32.xlu0 %v941, 112
    %v1161 = vpop.permute.xlu0 %1160
    %1162 = vrot.lane.b32.xlu0 %v942, 112
    %v1163 = vpop.permute.xlu0 %1162
    %1164 = vrot.lane.b32.xlu0 %v943, 112
    %v1165 = vpop.permute.xlu0 %1164
    %1166 = vrot.lane.b32.xlu0 %v944, 112
    %v1167 = vpop.permute.xlu0 %1166
    %1168 = vrot.lane.b32.xlu0 %v945, 112
    %v1169 = vpop.permute.xlu0 %1168
    %v1170 = vsel %vm599, %v1167, %v1169
    %v1171 = vsel %vm599, %v1165, %v1167
    %v1172 = vsel %vm599, %v1163, %v1165
    %v1173 = vsel %vm599, %v1161, %v1163
    %v1174 = vsel %vm599, %v1159, %v1161
    %v1175 = vsel %vm599, %v1157, %v1159
    %v1176 = vsel %vm599, %v1155, %v1157
    %v1177 = vsel %vm599, %v1169, %v1155
    %v1178 = vmul.f32 %v1176, %v278
    %v1179 = vmul.f32 %v1175, %v282
    %v1180 = vmul.f32 %v1174, %v286
    %v1181 = vmul.f32 %v1173, %v290
    %v1182 = vmul.f32 %v1172, %v294
    %v1183 = vmul.f32 %v1171, %v298
    %v1184 = vmul.f32 %v1170, %v302
    %v1185 = vmul.f32 %v1177, %v306
    %1186 = vrot.lane.b32.xlu0 %v938, 111
    %v1187 = vpop.permute.xlu0 %1186
    %1188 = vrot.lane.b32.xlu0 %v939, 111
    %v1189 = vpop.permute.xlu0 %1188
    %1190 = vrot.lane.b32.xlu0 %v940, 111
    %v1191 = vpop.permute.xlu0 %1190
    %1192 = vrot.lane.b32.xlu0 %v941, 111
    %v1193 = vpop.permute.xlu0 %1192
    %1194 = vrot.lane.b32.xlu0 %v942, 111
    %v1195 = vpop.permute.xlu0 %1194
    %1196 = vrot.lane.b32.xlu0 %v943, 111
    %v1197 = vpop.permute.xlu0 %1196
    %1198 = vrot.lane.b32.xlu0 %v944, 111
    %v1199 = vpop.permute.xlu0 %1198
    %1200 = vrot.lane.b32.xlu0 %v945, 111
    %v1201 = vpop.permute.xlu0 %1200
    %v1202 = vsel %vm632, %v1199, %v1201
    %v1203 = vsel %vm632, %v1197, %v1199
    %v1204 = vsel %vm632, %v1195, %v1197
    %v1205 = vsel %vm632, %v1193, %v1195
    %v1206 = vsel %vm632, %v1191, %v1193
    %v1207 = vsel %vm632, %v1189, %v1191
    %v1208 = vsel %vm632, %v1187, %v1189
    %v1209 = vsel %vm632, %v1201, %v1187
    %v1210 = vmul.f32 %v1208, %v321
    %v1211 = vmul.f32 %v1207, %v325
    %v1212 = vmul.f32 %v1206, %v329
    %v1213 = vmul.f32 %v1205, %v333
    %v1214 = vmul.f32 %v1204, %v337
    %v1215 = vmul.f32 %v1203, %v341
    %v1216 = vmul.f32 %v1202, %v345
    %v1217 = vmul.f32 %v1209, %v349
    %s1218 = scalar_lea.vmem %s2, 8
    %v1219 = vld [vmem:[%s1218] sm:$0xff]
    %v1221 = vsel %vm650, %v1219, 0
    %1223 = vmatprep.subr.mxu0 0.0
    %1224 = vmatpush1.msra.mxu0 0.0
    %1225 = vmatprep.subr.mxu0 0.0
    %1226 = vmatpush1.msra.mxu0 0.0
    %1227 = vmatprep.subr.mxu0 0.0
    %1228 = vmatpush1.msra.mxu0 0.0
    %1229 = vmatprep.subr.mxu0 0.0
    %1230 = vmatpush1.msra.mxu0 0.0
    %1231 = vmatprep.subr.mxu0 0.0
    %1232 = vmatpush1.msra.mxu0 0.0
    %1233 = vmatprep.subr.mxu0 0.0
    %1234 = vmatpush1.msra.mxu0 0.0
    %1235 = vmatprep.subr.mxu0 %v362
    %1236 = vmatpush1.msra.mxu0 %v362
    %1237 = vmatprep.subr.mxu0 %v1211
    %1238 = vmatpush1.msra.mxu0 %v1210
    %1239 = vmatprep.subr.mxu0 %v1179
    %1240 = vmatpush1.msra.mxu0 %v1178
    %1241 = vmatprep.subr.mxu0 %v1147
    %1242 = vmatpush1.msra.mxu0 %v1146
    %1243 = vmatprep.subr.mxu0 %v1115
    %1244 = vmatpush1.msra.mxu0 %v1114
    %1245 = vmatprep.subr.mxu0 %v939
    %1246 = vmatpush1.msra.mxu0 %v938
    %1247 = vmatprep.subr.mxu0 %v1083
    %1248 = vmatpush1.msra.mxu0 %v1082
    %1249 = vmatprep.subr.mxu0 %v1051
    %1250 = vmatpush1.msra.mxu0 %v1050
    %1251 = vmatprep.subr.mxu0 %v1019
    %1252 = vmatpush1.msra.mxu0 %v1018
    %1253 = vmatprep.subr.mxu0 %v987
    %1254 = vmatpush1.msra.mxu0 %v986
    %1255 = vmatprep.subr.mxu0 0.0
    %1256 = vmatpush2.msra.mxu0 0.0
    %1257 = vmatprep.subr.mxu0 0.0
    %1258 = vmatpush2.msra.mxu0 0.0
    %1259 = vmatprep.subr.mxu0 0.0
    %1260 = vmatpush2.msra.mxu0 0.0
    %1261 = vmatprep.subr.mxu0 0.0
    %1262 = vmatpush2.msra.mxu0 0.0
    %1263 = vmatprep.subr.mxu0 0.0
    %1264 = vmatpush2.msra.mxu0 0.0
    %1265 = vmatprep.subr.mxu0 0.0
    %1266 = vmatpush2.msra.mxu0 0.0
    %1267 = vmatprep.subr.mxu0 0.0
    %1268 = vmatpush2.msra.mxu0 0.0
    %1269 = vmatprep.subr.mxu0 0.0
    %1270 = vmatpush2.msra.mxu0 0.0
    %1271 = vmatprep.subr.mxu0 0.0
    %1272 = vmatpush2.msra.mxu0 0.0
    %1273 = vmatprep.subr.mxu0 0.0
    %1274 = vmatpush2.msra.mxu0 0.0
    %1275 = vmatprep.subr.mxu0 0.0
    %1276 = vmatpush2.msra.mxu0 0.0
    %1277 = vmatprep.subr.mxu0 0.0
    %1278 = vmatpush2.msra.mxu0 0.0
    %1279 = vmatprep.subr.mxu0 0.0
    %1280 = vmatpush2.msra.mxu0 0.0
    %1281 = vmatprep.subr.mxu0 0.0
    %1282 = vmatpush2.msra.mxu0 0.0
    %1283 = vmatprep.subr.mxu0 0.0
    %1284 = vmatpush2.msra.mxu0 0.0
    %1285 = vmatprep.subr.mxu0 0.0
    %1286 = vmatpush2.msra.mxu0 0.0
    %1287 = vmatprep.mubr.f32.mxu0 0.0
    %1288 = vmatmul.mubr.f32.gmra.mxu0 %v1221
    %v1289 = vpop.f32.mrf.mxu0
    %v1290 = vadd.f32 0.0, %v1289
    %v1291 = vpop.f32.mrf.mxu0
    %v1292 = vadd.f32 0.0, %v1291
    %1293 = vdwg.mxu0
    %1294 = vmatprep.subr.mxu0 0.0
    %1295 = vmatpush1.msra.mxu0 0.0
    %1296 = vmatprep.subr.mxu0 0.0
    %1297 = vmatpush1.msra.mxu0 0.0
    %1298 = vmatprep.subr.mxu0 0.0
    %1299 = vmatpush1.msra.mxu0 0.0
    %1300 = vmatprep.subr.mxu0 0.0
    %1301 = vmatpush1.msra.mxu0 0.0
    %1302 = vmatprep.subr.mxu0 0.0
    %1303 = vmatpush1.msra.mxu0 0.0
    %1304 = vmatprep.subr.mxu0 0.0
    %1305 = vmatpush1.msra.mxu0 0.0
    %1306 = vmatprep.subr.mxu0 %v362
    %1307 = vmatpush1.msra.mxu0 %v362
    %1308 = vmatprep.subr.mxu0 %v1213
    %1309 = vmatpush1.msra.mxu0 %v1212
    %1310 = vmatprep.subr.mxu0 %v1181
    %1311 = vmatpush1.msra.mxu0 %v1180
    %1312 = vmatprep.subr.mxu0 %v1149
    %1313 = vmatpush1.msra.mxu0 %v1148
    %1314 = vmatprep.subr.mxu0 %v1117
    %1315 = vmatpush1.msra.mxu0 %v1116
    %1316 = vmatprep.subr.mxu0 %v941
    %1317 = vmatpush1.msra.mxu0 %v940
    %1318 = vmatprep.subr.mxu0 %v1085
    %1319 = vmatpush1.msra.mxu0 %v1084
    %1320 = vmatprep.subr.mxu0 %v1053
    %1321 = vmatpush1.msra.mxu0 %v1052
    %1322 = vmatprep.subr.mxu0 %v1021
    %1323 = vmatpush1.msra.mxu0 %v1020
    %1324 = vmatprep.subr.mxu0 %v989
    %1325 = vmatpush1.msra.mxu0 %v988
    %1326 = vmatprep.subr.mxu0 0.0
    %1327 = vmatpush2.msra.mxu0 0.0
    %1328 = vmatprep.subr.mxu0 0.0
    %1329 = vmatpush2.msra.mxu0 0.0
    %1330 = vmatprep.subr.mxu0 0.0
    %1331 = vmatpush2.msra.mxu0 0.0
    %1332 = vmatprep.subr.mxu0 0.0
    %1333 = vmatpush2.msra.mxu0 0.0
    %1334 = vmatprep.subr.mxu0 0.0
    %1335 = vmatpush2.msra.mxu0 0.0
    %1336 = vmatprep.subr.mxu0 0.0
    %1337 = vmatpush2.msra.mxu0 0.0
    %1338 = vmatprep.subr.mxu0 0.0
    %1339 = vmatpush2.msra.mxu0 0.0
    %1340 = vmatprep.subr.mxu0 0.0
    %1341 = vmatpush2.msra.mxu0 0.0
    %1342 = vmatprep.subr.mxu0 0.0
    %1343 = vmatpush2.msra.mxu0 0.0
    %1344 = vmatprep.subr.mxu0 0.0
    %1345 = vmatpush2.msra.mxu0 0.0
    %1346 = vmatprep.subr.mxu0 0.0
    %1347 = vmatpush2.msra.mxu0 0.0
    %1348 = vmatprep.subr.mxu0 0.0
    %1349 = vmatpush2.msra.mxu0 0.0
    %1350 = vmatprep.subr.mxu0 0.0
    %1351 = vmatpush2.msra.mxu0 0.0
    %1352 = vmatprep.subr.mxu0 0.0
    %1353 = vmatpush2.msra.mxu0 0.0
    %1354 = vmatprep.subr.mxu0 0.0
    %1355 = vmatpush2.msra.mxu0 0.0
    %1356 = vmatprep.subr.mxu0 0.0
    %1357 = vmatpush2.msra.mxu0 0.0
    %1358 = vmatprep.mubr.f32.mxu0 0.0
    %1359 = vmatmul.mubr.f32.gmra.mxu0 %v1221
    %v1360 = vpop.f32.mrf.mxu0
    %v1361 = vadd.f32 0.0, %v1360
    %v1362 = vpop.f32.mrf.mxu0
    %v1363 = vadd.f32 0.0, %v1362
    %1364 = vdwg.mxu0
    %1365 = vmatprep.subr.mxu0 0.0
    %1366 = vmatpush1.msra.mxu0 0.0
    %1367 = vmatprep.subr.mxu0 0.0
    %1368 = vmatpush1.msra.mxu0 0.0
    %1369 = vmatprep.subr.mxu0 0.0
    %1370 = vmatpush1.msra.mxu0 0.0
    %1371 = vmatprep.subr.mxu0 0.0
    %1372 = vmatpush1.msra.mxu0 0.0
    %1373 = vmatprep.subr.mxu0 0.0
    %1374 = vmatpush1.msra.mxu0 0.0
    %1375 = vmatprep.subr.mxu0 0.0
    %1376 = vmatpush1.msra.mxu0 0.0
    %1377 = vmatprep.subr.mxu0 %v362
    %1378 = vmatpush1.msra.mxu0 %v362
    %1379 = vmatprep.subr.mxu0 %v1215
    %1380 = vmatpush1.msra.mxu0 %v1214
    %1381 = vmatprep.subr.mxu0 %v1183
    %1382 = vmatpush1.msra.mxu0 %v1182
    %1383 = vmatprep.subr.mxu0 %v1151
    %1384 = vmatpush1.msra.mxu0 %v1150
    %1385 = vmatprep.subr.mxu0 %v1119
    %1386 = vmatpush1.msra.mxu0 %v1118
    %1387 = vmatprep.subr.mxu0 %v943
    %1388 = vmatpush1.msra.mxu0 %v942
    %1389 = vmatprep.subr.mxu0 %v1087
    %1390 = vmatpush1.msra.mxu0 %v1086
    %1391 = vmatprep.subr.mxu0 %v1055
    %1392 = vmatpush1.msra.mxu0 %v1054
    %1393 = vmatprep.subr.mxu0 %v1023
    %1394 = vmatpush1.msra.mxu0 %v1022
    %1395 = vmatprep.subr.mxu0 %v991
    %1396 = vmatpush1.msra.mxu0 %v990
    %1397 = vmatprep.subr.mxu0 0.0
    %1398 = vmatpush2.msra.mxu0 0.0
    %1399 = vmatprep.subr.mxu0 0.0
    %1400 = vmatpush2.msra.mxu0 0.0
    %1401 = vmatprep.subr.mxu0 0.0
    %1402 = vmatpush2.msra.mxu0 0.0
    %1403 = vmatprep.subr.mxu0 0.0
    %1404 = vmatpush2.msra.mxu0 0.0
    %1405 = vmatprep.subr.mxu0 0.0
    %1406 = vmatpush2.msra.mxu0 0.0
    %1407 = vmatprep.subr.mxu0 0.0
    %1408 = vmatpush2.msra.mxu0 0.0
    %1409 = vmatprep.subr.mxu0 0.0
    %1410 = vmatpush2.msra.mxu0 0.0
    %1411 = vmatprep.subr.mxu0 0.0
    %1412 = vmatpush2.msra.mxu0 0.0
    %1413 = vmatprep.subr.mxu0 0.0
    %1414 = vmatpush2.msra.mxu0 0.0
    %1415 = vmatprep.subr.mxu0 0.0
    %1416 = vmatpush2.msra.mxu0 0.0
    %1417 = vmatprep.subr.mxu0 0.0
    %1418 = vmatpush2.msra.mxu0 0.0
    %1419 = vmatprep.subr.mxu0 0.0
    %1420 = vmatpush2.msra.mxu0 0.0
    %1421 = vmatprep.subr.mxu0 0.0
    %1422 = vmatpush2.msra.mxu0 0.0
    %1423 = vmatprep.subr.mxu0 0.0
    %1424 = vmatpush2.msra.mxu0 0.0
    %1425 = vmatprep.subr.mxu0 0.0
    %1426 = vmatpush2.msra.mxu0 0.0
    %1427 = vmatprep.subr.mxu0 0.0
    %1428 = vmatpush2.msra.mxu0 0.0
    %1429 = vmatprep.mubr.f32.mxu0 0.0
    %1430 = vmatmul.mubr.f32.gmra.mxu0 %v1221
    %v1431 = vpop.f32.mrf.mxu0
    %v1432 = vadd.f32 0.0, %v1431
    %v1433 = vpop.f32.mrf.mxu0
    %v1434 = vadd.f32 0.0, %v1433
    %1435 = vdwg.mxu0
    %1436 = vmatprep.subr.mxu0 0.0
    %1437 = vmatpush1.msra.mxu0 0.0
    %1438 = vmatprep.subr.mxu0 0.0
    %1439 = vmatpush1.msra.mxu0 0.0
    %1440 = vmatprep.subr.mxu0 0.0
    %1441 = vmatpush1.msra.mxu0 0.0
    %1442 = vmatprep.subr.mxu0 0.0
    %1443 = vmatpush1.msra.mxu0 0.0
    %1444 = vmatprep.subr.mxu0 0.0
    %1445 = vmatpush1.msra.mxu0 0.0
    %1446 = vmatprep.subr.mxu0 0.0
    %1447 = vmatpush1.msra.mxu0 0.0
    %1448 = vmatprep.subr.mxu0 %v362
    %1449 = vmatpush1.msra.mxu0 %v362
    %1450 = vmatprep.subr.mxu0 %v1217
    %1451 = vmatpush1.msra.mxu0 %v1216
    %1452 = vmatprep.subr.mxu0 %v1185
    %1453 = vmatpush1.msra.mxu0 %v1184
    %1454 = vmatprep.subr.mxu0 %v1153
    %1455 = vmatpush1.msra.mxu0 %v1152
    %1456 = vmatprep.subr.mxu0 %v1121
    %1457 = vmatpush1.msra.mxu0 %v1120
    %1458 = vmatprep.subr.mxu0 %v945
    %1459 = vmatpush1.msra.mxu0 %v944
    %1460 = vmatprep.subr.mxu0 %v1089
    %1461 = vmatpush1.msra.mxu0 %v1088
    %1462 = vmatprep.subr.mxu0 %v1057
    %1463 = vmatpush1.msra.mxu0 %v1056
    %1464 = vmatprep.subr.mxu0 %v1025
    %1465 = vmatpush1.msra.mxu0 %v1024
    %1466 = vmatprep.subr.mxu0 %v993
    %1467 = vmatpush1.msra.mxu0 %v992
    %1468 = vmatprep.subr.mxu0 0.0
    %1469 = vmatpush2.msra.mxu0 0.0
    %1470 = vmatprep.subr.mxu0 0.0
    %1471 = vmatpush2.msra.mxu0 0.0
    %1472 = vmatprep.subr.mxu0 0.0
    %1473 = vmatpush2.msra.mxu0 0.0
    %1474 = vmatprep.subr.mxu0 0.0
    %1475 = vmatpush2.msra.mxu0 0.0
    %1476 = vmatprep.subr.mxu0 0.0
    %1477 = vmatpush2.msra.mxu0 0.0
    %1478 = vmatprep.subr.mxu0 0.0
    %1479 = vmatpush2.msra.mxu0 0.0
    %1480 = vmatprep.subr.mxu0 0.0
    %1481 = vmatpush2.msra.mxu0 0.0
    %1482 = vmatprep.subr.mxu0 0.0
    %1483 = vmatpush2.msra.mxu0 0.0
    %1484 = vmatprep.subr.mxu0 0.0
    %1485 = vmatpush2.msra.mxu0 0.0
    %1486 = vmatprep.subr.mxu0 0.0
    %1487 = vmatpush2.msra.mxu0 0.0
    %1488 = vmatprep.subr.mxu0 0.0
    %1489 = vmatpush2.msra.mxu0 0.0
    %1490 = vmatprep.subr.mxu0 0.0
    %1491 = vmatpush2.msra.mxu0 0.0
    %1492 = vmatprep.subr.mxu0 0.0
    %1493 = vmatpush2.msra.mxu0 0.0
    %1494 = vmatprep.subr.mxu0 0.0
    %1495 = vmatpush2.msra.mxu0 0.0
    %1496 = vmatprep.subr.mxu0 0.0
    %1497 = vmatpush2.msra.mxu0 0.0
    %1498 = vmatprep.subr.mxu0 0.0
    %1499 = vmatpush2.msra.mxu0 0.0
    %1500 = vmatprep.mubr.f32.mxu0 0.0
    %1501 = vmatmul.mubr.f32.gmra.mxu0 %v1221
    %v1502 = vpop.f32.mrf.mxu0
    %v1503 = vadd.f32 0.0, %v1502
    %v1504 = vpop.f32.mrf.mxu0
    %v1505 = vadd.f32 0.0, %v1504
    %1506 = vdwg.mxu0
    %v1507 = vmax.f32 %v1290, 0.0
    %v1508 = vmax.f32 %v1292, 0.0
    %v1509 = vmax.f32 %v1361, 0.0
    %v1510 = vmax.f32 %v1363, 0.0
    %v1511 = vmax.f32 %v1432, 0.0
    %v1512 = vmax.f32 %v1434, 0.0
    %v1513 = vmax.f32 %v1503, 0.0
    %v1514 = vmax.f32 %v1505, 0.0
    %v1515 = vsub.f32 %v1507, %v1511
    %v1516 = vsub.f32 %v1508, %v1512
    %v1517 = vsub.f32 %v1509, %v1513
    %v1518 = vsub.f32 %v1510, %v1514
    %v1519 = vmul.f32 %v1515, %v1515
    %v1520 = vmul.f32 %v1516, %v1516
    %v1521 = vmul.f32 %v1517, %v1517
    %v1522 = vmul.f32 %v1518, %v1518
    %v1523 = vmul.f32 %v1519, 0.00024414063
    %v1524 = vmul.f32 %v1520, 0.00024414063
    %v1525 = vmul.f32 %v1521, 0.00024414063
    %v1526 = vmul.f32 %v1522, 0.00024414063
    %v1527 = vadd.f32 %v958, %v1523
    %v1528 = vadd.f32 %v959, %v1524
    %v1529 = vadd.f32 %v960, %v1525
    %v1530 = vadd.f32 %v961, %v1526
    %v1531 = vadd.f32 %v1527, %v1528
    %v1532 = vadd.f32 %v1531, %v1529
    %v1533 = vadd.f32 %v1532, %v1530
    %1534 = vadd.xlane.f32.xlu0 %v1533
    %v1535 = vpop.xlane.xlu0 %1534
    %v1536 = vrot.slane %v1535, 4
    %v1537 = vadd.f32 %v1535, %v1536
    %v1538 = vrot.slane %v1537, 2
    %v1539 = vadd.f32 %v1537, %v1538
    %v1540 = vrot.slane %v1539, 1
    %v1541 = vadd.f32 %v1539, %v1540
    %s1542 = vtos %v1541
    %s1543 = scalar_lea.smem [#allocation2], 0
    %1544 = sst [smem:[%s1543]] %s1542
    // Predicated region
    $region14: #{spatial_loss.1} parent=1 // pred_check
      _
    $region15: #{spatial_loss.1} parent=1 // pred_check_branch
      %1546 = sbr.rel (0) target = $region17
    $region16: #{spatial_loss.1} parent=1 // pred_region
      %s1548 = ssub.s32 16, 16
      %1549 = vsyncadd [#allocation3], %s1548
      %1552 = dma.smem_to_hbm [#allocation2], 16, %s3, [#allocation3]
    $region17: #{spatial_loss.1} parent=1 // pred_fallthru
      _
    // Predicated region
    $region18: #{spatial_loss.1} parent=1 // pred_check
      _
    $region19: #{spatial_loss.1} parent=1 // pred_check_branch
      %1554 = sbr.rel (0) target = $region21
    $region20: #{spatial_loss.1} parent=1 // pred_region
      %1555 = dma.done [#allocation3], 16
    $region21: #{spatial_loss.1} parent=1 // pred_fallthru
      _
    %1556 = sfence
    %1557 = vsyncpa [#allocation3], 1

</llo_original>
